<compile_context>
chip_gen: v7x
topology: tpu7x:2x2x1
jax: 0.10.0
libtpu: 0.0.40
codegen_flags: <defaults>
</compile_context>

<pallas_src>
import jax
import jax.numpy as jnp
import numpy as np
from jax import lax
from jax.experimental import pallas as pl
from jax.experimental.pallas import tpu as pltpu

# --------------------- config (small, deterministic) ---------------------
B          = 2
SEQ_LEN    = 16
PRED_LEN   = 8
ENC_IN     = 4        # N channels == tokens
D_MODEL    = 32
N_HEADS    = 4
D_FF       = 64
E_LAYERS   = 2
MOVING_AVG = 5        # odd -> moving-average trend keeps length SEQ_LEN
PAD        = (MOVING_AVG - 1) // 2
D_HEAD     = D_MODEL // N_HEADS
EPS_LN     = 1e-5
EPS_REV    = 1e-5
BN         = B * ENC_IN
HBN        = N_HEADS * BN
OUT_W      = 128      # lane-dense output width (>= PRED_LEN)

# --------------------- bias-slab row layout (static) ---------------------
ROW_EMB, ROW_NG, ROW_NB = 0, 1, 2
LAYER_ROW0 = 3
(OFF_BQ, OFF_BK, OFF_BV, OFF_BO, OFF_B2,
 OFF_LN1G, OFF_LN1B, OFF_LN2G, OFF_LN2B) = range(9)
ROWS_PER_LAYER = 9
N_B32_ROWS = LAYER_ROW0 + ROWS_PER_LAYER * E_LAYERS   # 21

# --------------------- cols (per-row scalars) layout ---------------------
COL_RW, COL_RB, COL_INVAW, COL_GATE0 = 0, 1, 2, 3
N_COLS = 8


# ------------------------------ the kernel ------------------------------
def adaptformer_kernel(x_ref, cols_ref, hm_ref, sb_ref, gm_ref,
                       emb_w_ref, b32_ref, b64_ref, bp_ref,
                       wattn_ref, w1_ref, w2_ref, wp_ref, out_ref):
    D = D_MODEL

    cols = cols_ref[...]                               # [BN, N_COLS]
    rw     = cols[:, COL_RW:COL_RW + 1]                # RevIN affine weight
    rb     = cols[:, COL_RB:COL_RB + 1]                # RevIN affine bias
    inv_aw = cols[:, COL_INVAW:COL_INVAW + 1]          # 1/(rev_w + eps^2)

    x = x_ref[...]                                     # [BN, L]; rows=(batch,channel), lanes=time

    # ---- RevIN normalize (stats over time, per (batch, channel) row) ----
    mean = jnp.mean(x, axis=1, keepdims=True)                       # [BN, 1]
    var = jnp.mean((x - mean) ** 2, axis=1, keepdims=True)          # unbiased=False
    inv_std = lax.rsqrt(var + EPS_REV)                              # EUP
    stdev = (var + EPS_REV) * inv_std                               # == sqrt(var+eps), no extra sqrt
    xn = (x - mean) * inv_std * rw + rb                             # [BN, L]

    # ---- decomposition + dual embedding (folded into one matmul at pack time) ----
    h = (jnp.dot(xn, emb_w_ref[...], preferred_element_type=jnp.float32)
         + b32_ref[ROW_EMB])                                        # [BN, D]

    def layernorm(z, g, b):
        mu = jnp.mean(z, axis=-1, keepdims=True)
        v = jnp.mean((z - mu) ** 2, axis=-1, keepdims=True)
        return (z - mu) * lax.rsqrt(v + EPS_LN) * g + b

    hm    = hm_ref[...]                                # [HBN, D]  head lane masks, stacked per head
    sbias = sb_ref[...]                                # [BN, HBN] batch block-diagonal additive mask
    gmat  = gm_ref[...]                                # [HBN, HBN] per-head group-sum matrix
    scale = 1.0 / (D_HEAD ** 0.5)

    # ---- encoder layers ----
    for l in range(E_LAYERS):                          # static unroll
        base = LAYER_ROW0 + l * ROWS_PER_LAYER

        # separate aligned projections (no 32/64-lane slicing of a fused QKV)
        q = jnp.dot(h, wattn_ref[l, 0], preferred_element_type=jnp.float32) + b32_ref[base + OFF_BQ]
        k = jnp.dot(h, wattn_ref[l, 1], preferred_element_type=jnp.float32) + b32_ref[base + OFF_BK]
        v = jnp.dot(h, wattn_ref[l, 2], preferred_element_type=jnp.float32) + b32_ref[base + OFF_BV]

        # head-stacked masked K / V: sublane block hh carries only head hh's lanes
        k4 = jnp.concatenate([k] * N_HEADS, axis=0) * hm            # [HBN, D]
        v4 = jnp.concatenate([v] * N_HEADS, axis=0) * hm            # [HBN, D]

        # all-head scores in one matmul, fused softmax over the [BN, HBN] tile
        s = (lax.dot_general(q, k4, (((1,), (1,)), ((), ())),
                             preferred_element_type=jnp.float32) * scale
             + sbias)                                                # [BN, HBN]
        s = s - jnp.max(s, axis=-1, keepdims=True)                   # global row max (shift-invariant)
        e = jnp.exp(s)
        den = jnp.dot(e, gmat, preferred_element_type=jnp.float32)   # per-head group sums, broadcast
        a = e * pl.reciprocal(den, approx=True)                      # EUP
        attn = jnp.dot(a, v4, preferred_element_type=jnp.float32)    # [BN, D] (heads land on disjoint lanes)

        attn = (jnp.dot(attn, wattn_ref[l, 3], preferred_element_type=jnp.float32)
                + b32_ref[base + OFF_BO])
        # TODO(synk): use_adaptive_weight internals not given; per-channel gate guess.
        attn = attn * cols[:, COL_GATE0 + l:COL_GATE0 + l + 1]

        h2 = layernorm(h + attn, b32_ref[base + OFF_LN1G], b32_ref[base + OFF_LN1B])
        y = jnp.dot(h2, w1_ref[l], preferred_element_type=jnp.float32) + b64_ref[l]
        # TODO(synk): PyTorch F.gelu default is exact erf; tanh approximation used here.
        y = jax.nn.gelu(y, approximate=True)
        y = jnp.dot(y, w2_ref[l], preferred_element_type=jnp.float32) + b32_ref[base + OFF_B2]
        h = layernorm(h2 + y, b32_ref[base + OFF_LN2G], b32_ref[base + OFF_LN2B])

    # ---- encoder final norm + projection (padded to 128 output lanes) ----
    h = layernorm(h, b32_ref[ROW_NG], b32_ref[ROW_NB])
    dec = (jnp.dot(h, wp_ref[...], preferred_element_type=jnp.float32)
           + bp_ref[...])                                            # [BN, 128]

    # ---- RevIN denormalize (multiply by precomputed 1/(w+eps^2)) ----
    dec = (dec - rb) * inv_aw
    dec = dec * stdev + mean
    out_ref[...] = dec                                               # lane-dense unmasked store


# ------------------------------ wrapper ------------------------------
def adaptformer_forward(x_enc, x_mark_enc, x_dec, x_mark_dec, packed):
    """Matches Model.forward; time marks / decoder inputs are unused by the module."""
    del x_mark_enc, x_dec, x_mark_dec
    Bsz, L, N = x_enc.shape
    assert (Bsz, L, N) == (B, SEQ_LEN, ENC_IN)

    # layout plumbing only: rows = (batch, channel), lanes = time
    x_t = jnp.transpose(x_enc, (0, 2, 1)).reshape(Bsz * N, L).astype(jnp.float32)

    vmem = pl.BlockSpec(memory_space=pltpu.MemorySpace.VMEM)
    out = pl.pallas_call(
        adaptformer_kernel,
        out_shape=jax.ShapeDtypeStruct((Bsz * N, OUT_W), jnp.float32),
        in_specs=[vmem] * 13,
        out_specs=vmem,
    )(x_t, packed["cols"], packed["hm"], packed["sbias"], packed["gmat"],
      packed["emb_w"], packed["b32"], packed["b64"], packed["bp"],
      packed["wattn"], packed["w1"], packed["w2"], packed["wp"])

    # lane-dense [B*N, 128] slab -> [B, P, N]; [:, -pred_len:, :] is the identity here.
    dec_out = out[:, :PRED_LEN].reshape(Bsz, N, PRED_LEN).transpose(0, 2, 1)
    return dec_out, None          # output_attention=False -> attentions is None


# ------------------------------ params ------------------------------
def init_params(key):
    ks = jax.random.split(key, 10)
    f32 = jnp.float32

    def lin(k, shape):
        return (0.02 * jax.random.normal(k, shape)).astype(f32)

    return {
        # RevIN affine (per channel)
        "rev_w": jnp.ones((1, ENC_IN), f32),
        "rev_b": jnp.zeros((1, ENC_IN), f32),
        # DecompEmbedding: seasonal / trend Linear(seq_len -> d_model)
        "sW": lin(ks[0], (SEQ_LEN, D_MODEL)), "sb": jnp.zeros((1, D_MODEL), f32),
        "tW": lin(ks[1], (SEQ_LEN, D_MODEL)), "tb": jnp.zeros((1, D_MODEL), f32),
        # per-layer attention projections
        "Wq": lin(ks[2], (E_LAYERS, D_MODEL, D_MODEL)),
        "bq": jnp.zeros((E_LAYERS, 1, D_MODEL), f32),
        "Wk": lin(ks[3], (E_LAYERS, D_MODEL, D_MODEL)),
        "bk": jnp.zeros((E_LAYERS, 1, D_MODEL), f32),
        "Wv": lin(ks[4], (E_LAYERS, D_MODEL, D_MODEL)),
        "bv": jnp.zeros((E_LAYERS, 1, D_MODEL), f32),
        "Wo": lin(ks[5], (E_LAYERS, D_MODEL, D_MODEL)),
        "bo": jnp.zeros((E_LAYERS, 1, D_MODEL), f32),
        # adaptive per-channel weight (use_adaptive_weight), init to ones
        "adp": jnp.ones((E_LAYERS, ENC_IN, 1), f32),
        # per-layer FFN (Conv1d kernel_size=1 == Linear)
        "W1": lin(ks[6], (E_LAYERS, D_MODEL, D_FF)),
        "b1": jnp.zeros((E_LAYERS, 1, D_FF), f32),
        "W2": lin(ks[7], (E_LAYERS, D_FF, D_MODEL)),
        "b2": jnp.zeros((E_LAYERS, 1, D_MODEL), f32),
        # per-layer LayerNorms
        "ln1g": jnp.ones((E_LAYERS, 1, D_MODEL), f32),
        "ln1b": jnp.zeros((E_LAYERS, 1, D_MODEL), f32),
        "ln2g": jnp.ones((E_LAYERS, 1, D_MODEL), f32),
        "ln2b": jnp.zeros((E_LAYERS, 1, D_MODEL), f32),
        # encoder final norm
        "ng": jnp.ones((1, D_MODEL), f32),
        "nb": jnp.zeros((1, D_MODEL), f32),
        # projection Linear(d_model -> pred_len)
        "Wp": lin(ks[8], (D_MODEL, PRED_LEN)),
        "bp": jnp.zeros((1, PRED_LEN), f32),
    }


def pack_params(p):
    """One-time packing/folding of the module parameters into kernel slabs."""
    f32 = jnp.float32
    L, D = SEQ_LEN, D_MODEL

    # Replicate-padded moving average as a constant linear map: trend = xn @ A.
    A = np.zeros((L, L), np.float32)
    for t in range(L):
        for kk in range(MOVING_AVG):
            src = min(max(t + kk - PAD, 0), L - 1)
            A[src, t] += 1.0 / MOVING_AVG
    A = jnp.asarray(A)

    # h = seasonal@sW + sb + trend@tW + tb = xn @ (sW + A@(tW - sW)) + (sb + tb)
    emb_w = p["sW"] + A @ (p["tW"] - p["sW"])                  # [L, D]
    emb_b = p["sb"] + p["tb"]                                  # [1, D]

    def bc(v, w):                                              # broadcast vector -> [BN, w] tile
        v = jnp.asarray(v, f32).reshape(1, -1)[:, :w]
        return jnp.broadcast_to(v, (BN, w))

    rows32 = [None] * N_B32_ROWS
    rows32[ROW_EMB] = bc(emb_b, D)
    rows32[ROW_NG] = bc(p["ng"], D)
    rows32[ROW_NB] = bc(p["nb"], D)
    for l in range(E_LAYERS):
        base = LAYER_ROW0 + l * ROWS_PER_LAYER
        rows32[base + OFF_BQ] = bc(p["bq"][l], D)
        rows32[base + OFF_BK] = bc(p["bk"][l], D)
        rows32[base + OFF_BV] = bc(p["bv"][l], D)
        rows32[base + OFF_BO] = bc(p["bo"][l], D)
        rows32[base + OFF_B2] = bc(p["b2"][l], D)
        rows32[base + OFF_LN1G] = bc(p["ln1g"][l], D)
        rows32[base + OFF_LN1B] = bc(p["ln1b"][l], D)
        rows32[base + OFF_LN2G] = bc(p["ln2g"][l], D)
        rows32[base + OFF_LN2B] = bc(p["ln2b"][l], D)
    b32 = jnp.stack(rows32, axis=0)                            # [21, BN, D]

    b64 = jnp.stack([bc(p["b1"][l], D_FF) for l in range(E_LAYERS)], axis=0)  # [E, BN, 64]

    bp = jnp.zeros((1, OUT_W), f32).at[0, :PRED_LEN].set(p["bp"].reshape(-1))
    bp = jnp.broadcast_to(bp, (BN, OUT_W))                     # [BN, 128]
    wp = jnp.zeros((D, OUT_W), f32).at[:, :PRED_LEN].set(p["Wp"])  # [D, 128] lane-dense

    def col(v):                                                # per-channel -> [B*N, 1]
        v = jnp.asarray(v, f32).reshape(-1)
        return jnp.tile(v, (B,)).reshape(BN, 1)

    cols = jnp.zeros((BN, N_COLS), f32)
    cols = cols.at[:, COL_RW:COL_RW + 1].set(col(p["rev_w"]))
    cols = cols.at[:, COL_RB:COL_RB + 1].set(col(p["rev_b"]))
    cols = cols.at[:, COL_INVAW:COL_INVAW + 1].set(col(1.0 / (p["rev_w"] + EPS_REV * EPS_REV)))
    for l in range(E_LAYERS):
        cols = cols.at[:, COL_GATE0 + l:COL_GATE0 + l + 1].set(col(p["adp"][l]))

    # Constant attention masks, baked at pack time.
    hm = np.zeros((HBN, D), np.float32)                        # head lane masks, stacked per head
    for hh in range(N_HEADS):
        hm[hh * BN:(hh + 1) * BN, hh * D_HEAD:(hh + 1) * D_HEAD] = 1.0
    blk = np.where((np.arange(BN)[:, None] // ENC_IN) ==
                   (np.arange(BN)[None, :] // ENC_IN), 0.0, -1e30).astype(np.float32)
    sbias = np.tile(blk, (1, N_HEADS))                         # [BN, HBN]
    gmat = np.where((np.arange(HBN)[:, None] // BN) ==
                    (np.arange(HBN)[None, :] // BN), 1.0, 0.0).astype(np.float32)

    wattn = jnp.stack([p["Wq"], p["Wk"], p["Wv"], p["Wo"]], axis=1)  # [E, 4, D, D]

    return {
        "cols": cols,
        "hm": jnp.asarray(hm), "sbias": jnp.asarray(sbias), "gmat": jnp.asarray(gmat),
        "emb_w": emb_w, "b32": b32, "b64": b64, "bp": bp,
        "wattn": wattn, "w1": p["W1"], "w2": p["W2"], "wp": wp,
    }


# ------------------------------ main ------------------------------
if __name__ == "__main__":
    key = jax.random.PRNGKey(0)
    k_x, k_p = jax.random.split(key)

    x_enc = jax.random.normal(k_x, (B, SEQ_LEN, ENC_IN), dtype=jnp.float32)
    x_mark_enc = jnp.zeros((B, SEQ_LEN, 4), jnp.float32)       # unused by the model
    x_dec = jnp.zeros((B, PRED_LEN, ENC_IN), jnp.float32)      # unused by the model
    x_mark_dec = jnp.zeros((B, PRED_LEN, 4), jnp.float32)      # unused by the model

    params = init_params(k_p)
    packed = pack_params(params)                               # one-time packing / folding

    dec_out, attns = adaptformer_forward(x_enc, x_mark_enc, x_dec, x_mark_dec, packed)
    dec_out = jax.block_until_ready(dec_out)

    assert dec_out.shape == (B, PRED_LEN, ENC_IN), dec_out.shape
    assert attns is None
    assert bool(jnp.all(jnp.isfinite(dec_out)))
    print("KERNEL_OK")
</pallas_src>

<mosaic_0001>
module attributes {stable_mosaic.version = 11 : i64} {
  func.func @adaptformer_kernel(%arg0: memref<8x16xf32, #tpu.memory_space<vmem>>, %arg1: memref<8x8xf32, #tpu.memory_space<vmem>>, %arg2: memref<32x32xf32, #tpu.memory_space<vmem>>, %arg3: memref<8x32xf32, #tpu.memory_space<vmem>>, %arg4: memref<32x32xf32, #tpu.memory_space<vmem>>, %arg5: memref<16x32xf32, #tpu.memory_space<vmem>>, %arg6: memref<21x8x32xf32, #tpu.memory_space<vmem>>, %arg7: memref<2x8x64xf32, #tpu.memory_space<vmem>>, %arg8: memref<8x128xf32, #tpu.memory_space<vmem>>, %arg9: memref<2x4x32x32xf32, #tpu.memory_space<vmem>>, %arg10: memref<2x32x64xf32, #tpu.memory_space<vmem>>, %arg11: memref<2x64x32xf32, #tpu.memory_space<vmem>>, %arg12: memref<32x128xf32, #tpu.memory_space<vmem>>, %arg13: memref<8x128xf32, #tpu.memory_space<vmem>>) attributes {dimension_semantics = [], scalar_prefetch = 0 : i64, scratch_operands = 0 : i64, tpu.core_type = #tpu.core_type<tc>} {
    %c0 = arith.constant 0 : index
    %c0_0 = arith.constant 0 : index
    %0 = vector.load %arg1[%c0, %c0_0] : memref<8x8xf32, #tpu.memory_space<vmem>>, vector<8x8xf32>
    %1 = vector.extract_strided_slice %0 {offsets = [0, 0], sizes = [8, 1], strides = [1, 1]} : vector<8x8xf32> to vector<8x1xf32>
    %2 = vector.extract_strided_slice %0 {offsets = [0, 1], sizes = [8, 1], strides = [1, 1]} : vector<8x8xf32> to vector<8x1xf32>
    %3 = vector.extract_strided_slice %0 {offsets = [0, 2], sizes = [8, 1], strides = [1, 1]} : vector<8x8xf32> to vector<8x1xf32>
    %c0_1 = arith.constant 0 : index
    %c0_2 = arith.constant 0 : index
    %4 = vector.load %arg0[%c0_1, %c0_2] : memref<8x16xf32, #tpu.memory_space<vmem>>, vector<8x16xf32>
    %cst = arith.constant dense<0.000000e+00> : vector<8xf32>
    %5 = vector.multi_reduction <add>, %4, %cst [1] : vector<8x16xf32> to vector<8xf32>
    %6 = vector.shape_cast %5 : vector<8xf32> to vector<8x1xf32>
    %cst_3 = arith.constant 1.600000e+01 : f32
    %7 = vector.broadcast %cst_3 : f32 to vector<8x1xf32>
    %8 = arith.divf %6, %7 : vector<8x1xf32>
    %9 = vector.broadcast %8 : vector<8x1xf32> to vector<8x16xf32>
    %10 = arith.subf %4, %9 : vector<8x16xf32>
    %11 = arith.mulf %10, %10 : vector<8x16xf32>
    %cst_4 = arith.constant dense<0.000000e+00> : vector<8xf32>
    %12 = vector.multi_reduction <add>, %11, %cst_4 [1] : vector<8x16xf32> to vector<8xf32>
    %13 = vector.shape_cast %12 : vector<8xf32> to vector<8x1xf32>
    %cst_5 = arith.constant 1.600000e+01 : f32
    %14 = vector.broadcast %cst_5 : f32 to vector<8x1xf32>
    %15 = arith.divf %13, %14 : vector<8x1xf32>
    %cst_6 = arith.constant 9.99999974E-6 : f32
    %16 = vector.broadcast %cst_6 : f32 to vector<8x1xf32>
    %17 = arith.addf %15, %16 : vector<8x1xf32>
    %18 = math.rsqrt %17 : vector<8x1xf32>
    %cst_7 = arith.constant 9.99999974E-6 : f32
    %19 = vector.broadcast %cst_7 : f32 to vector<8x1xf32>
    %20 = arith.addf %15, %19 : vector<8x1xf32>
    %21 = arith.mulf %20, %18 : vector<8x1xf32>
    %22 = vector.broadcast %8 : vector<8x1xf32> to vector<8x16xf32>
    %23 = arith.subf %4, %22 : vector<8x16xf32>
    %24 = vector.broadcast %18 : vector<8x1xf32> to vector<8x16xf32>
    %25 = arith.mulf %23, %24 : vector<8x16xf32>
    %26 = vector.broadcast %1 : vector<8x1xf32> to vector<8x16xf32>
    %27 = arith.mulf %25, %26 : vector<8x16xf32>
    %28 = vector.broadcast %2 : vector<8x1xf32> to vector<8x16xf32>
    %29 = arith.addf %27, %28 : vector<8x16xf32>
    %c0_8 = arith.constant 0 : index
    %c0_9 = arith.constant 0 : index
    %30 = vector.load %arg5[%c0_8, %c0_9] : memref<16x32xf32, #tpu.memory_space<vmem>>, vector<16x32xf32>
    %cst_10 = arith.constant dense<0.000000e+00> : vector<8x32xf32>
    %31 = tpu.matmul %29, %30, %cst_10 {dimension_numbers = #tpu.dot_dimension_numbers<[1], [0], [0], [1], [0, 0, 1, 1], [], []>} : vector<8x16xf32>, vector<16x32xf32>, vector<8x32xf32> -> vector<8x32xf32>
    %c0_11 = arith.constant 0 : index
    %c0_12 = arith.constant 0 : index
    %c0_13 = arith.constant 0 : index
    %32 = vector.load %arg6[%c0_11, %c0_12, %c0_13] : memref<21x8x32xf32, #tpu.memory_space<vmem>>, vector<1x8x32xf32>
    %33 = vector.shape_cast %32 : vector<1x8x32xf32> to vector<8x32xf32>
    %34 = arith.addf %31, %33 : vector<8x32xf32>
    %c0_14 = arith.constant 0 : index
    %c0_15 = arith.constant 0 : index
    %35 = vector.load %arg2[%c0_14, %c0_15] : memref<32x32xf32, #tpu.memory_space<vmem>>, vector<32x32xf32>
    %c0_16 = arith.constant 0 : index
    %c0_17 = arith.constant 0 : index
    %36 = vector.load %arg3[%c0_16, %c0_17] : memref<8x32xf32, #tpu.memory_space<vmem>>, vector<8x32xf32>
    %c0_18 = arith.constant 0 : index
    %c0_19 = arith.constant 0 : index
    %37 = vector.load %arg4[%c0_18, %c0_19] : memref<32x32xf32, #tpu.memory_space<vmem>>, vector<32x32xf32>
    %c0_20 = arith.constant 0 : index
    %c0_21 = arith.constant 0 : index
    %c0_22 = arith.constant 0 : index
    %c0_23 = arith.constant 0 : index
    %38 = vector.load %arg9[%c0_20, %c0_21, %c0_22, %c0_23] : memref<2x4x32x32xf32, #tpu.memory_space<vmem>>, vector<1x1x32x32xf32>
    %39 = vector.shape_cast %38 : vector<1x1x32x32xf32> to vector<32x32xf32>
    %cst_24 = arith.constant dense<0.000000e+00> : vector<8x32xf32>
    %40 = tpu.matmul %34, %39, %cst_24 {dimension_numbers = #tpu.dot_dimension_numbers<[1], [0], [0], [1], [0, 0, 1, 1], [], []>} : vector<8x32xf32>, vector<32x32xf32>, vector<8x32xf32> -> vector<8x32xf32>
    %c3 = arith.constant 3 : index
    %c0_25 = arith.constant 0 : index
    %c0_26 = arith.constant 0 : index
    %41 = vector.load %arg6[%c3, %c0_25, %c0_26] : memref<21x8x32xf32, #tpu.memory_space<vmem>>, vector<1x8x32xf32>
    %42 = vector.shape_cast %41 : vector<1x8x32xf32> to vector<8x32xf32>
    %43 = arith.addf %40, %42 : vector<8x32xf32>
    %c0_27 = arith.constant 0 : index
    %c1 = arith.constant 1 : index
    %c0_28 = arith.constant 0 : index
    %c0_29 = arith.constant 0 : index
    %44 = vector.load %arg9[%c0_27, %c1, %c0_28, %c0_29] : memref<2x4x32x32xf32, #tpu.memory_space<vmem>>, vector<1x1x32x32xf32>
    %45 = vector.shape_cast %44 : vector<1x1x32x32xf32> to vector<32x32xf32>
    %cst_30 = arith.constant dense<0.000000e+00> : vector<8x32xf32>
    %46 = tpu.matmul %34, %45, %cst_30 {dimension_numbers = #tpu.dot_dimension_numbers<[1], [0], [0], [1], [0, 0, 1, 1], [], []>} : vector<8x32xf32>, vector<32x32xf32>, vector<8x32xf32> -> vector<8x32xf32>
    %c4 = arith.constant 4 : index
    %c0_31 = arith.constant 0 : index
    %c0_32 = arith.constant 0 : index
    %47 = vector.load %arg6[%c4, %c0_31, %c0_32] : memref<21x8x32xf32, #tpu.memory_space<vmem>>, vector<1x8x32xf32>
    %48 = vector.shape_cast %47 : vector<1x8x32xf32> to vector<8x32xf32>
    %49 = arith.addf %46, %48 : vector<8x32xf32>
    %c0_33 = arith.constant 0 : index
    %c2 = arith.constant 2 : index
    %c0_34 = arith.constant 0 : index
    %c0_35 = arith.constant 0 : index
    %50 = vector.load %arg9[%c0_33, %c2, %c0_34, %c0_35] : memref<2x4x32x32xf32, #tpu.memory_space<vmem>>, vector<1x1x32x32xf32>
    %51 = vector.shape_cast %50 : vector<1x1x32x32xf32> to vector<32x32xf32>
    %cst_36 = arith.constant dense<0.000000e+00> : vector<8x32xf32>
    %52 = tpu.matmul %34, %51, %cst_36 {dimension_numbers = #tpu.dot_dimension_numbers<[1], [0], [0], [1], [0, 0, 1, 1], [], []>} : vector<8x32xf32>, vector<32x32xf32>, vector<8x32xf32> -> vector<8x32xf32>
    %c5 = arith.constant 5 : index
    %c0_37 = arith.constant 0 : index
    %c0_38 = arith.constant 0 : index
    %53 = vector.load %arg6[%c5, %c0_37, %c0_38] : memref<21x8x32xf32, #tpu.memory_space<vmem>>, vector<1x8x32xf32>
    %54 = vector.shape_cast %53 : vector<1x8x32xf32> to vector<8x32xf32>
    %55 = arith.addf %52, %54 : vector<8x32xf32>
    %56 = tpu.concatenate %49, %49, %49, %49 in 0 : vector<8x32xf32>, vector<8x32xf32>, vector<8x32xf32>, vector<8x32xf32> -> vector<32x32xf32>
    %57 = arith.mulf %56, %35 : vector<32x32xf32>
    %58 = tpu.concatenate %55, %55, %55, %55 in 0 : vector<8x32xf32>, vector<8x32xf32>, vector<8x32xf32>, vector<8x32xf32> -> vector<32x32xf32>
    %59 = arith.mulf %58, %35 : vector<32x32xf32>
    %cst_39 = arith.constant dense<0.000000e+00> : vector<8x32xf32>
    %60 = tpu.matmul %43, %57, %cst_39 {dimension_numbers = #tpu.dot_dimension_numbers<[1], [1], [0], [0], [0, 0, 1, 0], [], []>} : vector<8x32xf32>, vector<32x32xf32>, vector<8x32xf32> -> vector<8x32xf32>
    %cst_40 = arith.constant 0.353553385 : f32
    %61 = vector.broadcast %cst_40 : f32 to vector<8x32xf32>
    %62 = arith.mulf %60, %61 : vector<8x32xf32>
    %63 = arith.addf %62, %36 : vector<8x32xf32>
    %cst_41 = arith.constant dense<0xFF800000> : vector<8xf32>
    %64 = vector.multi_reduction <maximumf>, %63, %cst_41 [1] : vector<8x32xf32> to vector<8xf32>
    %65 = vector.shape_cast %64 : vector<8xf32> to vector<8x1xf32>
    %66 = vector.broadcast %65 : vector<8x1xf32> to vector<8x32xf32>
    %67 = arith.subf %63, %66 : vector<8x32xf32>
    %68 = math.exp %67 : vector<8x32xf32>
    %cst_42 = arith.constant dense<0.000000e+00> : vector<8x32xf32>
    %69 = tpu.matmul %68, %37, %cst_42 {dimension_numbers = #tpu.dot_dimension_numbers<[1], [0], [0], [1], [0, 0, 1, 1], [], []>} : vector<8x32xf32>, vector<32x32xf32>, vector<8x32xf32> -> vector<8x32xf32>
    %70 = tpu.reciprocal %69 {approx = true} : vector<8x32xf32> -> vector<8x32xf32>
    %71 = arith.mulf %68, %70 : vector<8x32xf32>
    %cst_43 = arith.constant dense<0.000000e+00> : vector<8x32xf32>
    %72 = tpu.matmul %71, %59, %cst_43 {dimension_numbers = #tpu.dot_dimension_numbers<[1], [0], [0], [1], [0, 0, 1, 1], [], []>} : vector<8x32xf32>, vector<32x32xf32>, vector<8x32xf32> -> vector<8x32xf32>
    %c0_44 = arith.constant 0 : index
    %c3_45 = arith.constant 3 : index
    %c0_46 = arith.constant 0 : index
    %c0_47 = arith.constant 0 : index
    %73 = vector.load %arg9[%c0_44, %c3_45, %c0_46, %c0_47] : memref<2x4x32x32xf32, #tpu.memory_space<vmem>>, vector<1x1x32x32xf32>
    %74 = vector.shape_cast %73 : vector<1x1x32x32xf32> to vector<32x32xf32>
    %cst_48 = arith.constant dense<0.000000e+00> : vector<8x32xf32>
    %75 = tpu.matmul %72, %74, %cst_48 {dimension_numbers = #tpu.dot_dimension_numbers<[1], [0], [0], [1], [0, 0, 1, 1], [], []>} : vector<8x32xf32>, vector<32x32xf32>, vector<8x32xf32> -> vector<8x32xf32>
    %c6 = arith.constant 6 : index
    %c0_49 = arith.constant 0 : index
    %c0_50 = arith.constant 0 : index
    %76 = vector.load %arg6[%c6, %c0_49, %c0_50] : memref<21x8x32xf32, #tpu.memory_space<vmem>>, vector<1x8x32xf32>
    %77 = vector.shape_cast %76 : vector<1x8x32xf32> to vector<8x32xf32>
    %78 = arith.addf %75, %77 : vector<8x32xf32>
    %79 = vector.extract_strided_slice %0 {offsets = [0, 3], sizes = [8, 1], strides = [1, 1]} : vector<8x8xf32> to vector<8x1xf32>
    %80 = vector.broadcast %79 : vector<8x1xf32> to vector<8x32xf32>
    %81 = arith.mulf %78, %80 : vector<8x32xf32>
    %82 = arith.addf %34, %81 : vector<8x32xf32>
    %c8 = arith.constant 8 : index
    %c0_51 = arith.constant 0 : index
    %c0_52 = arith.constant 0 : index
    %83 = vector.load %arg6[%c8, %c0_51, %c0_52] : memref<21x8x32xf32, #tpu.memory_space<vmem>>, vector<1x8x32xf32>
    %84 = vector.shape_cast %83 : vector<1x8x32xf32> to vector<8x32xf32>
    %c9 = arith.constant 9 : index
    %c0_53 = arith.constant 0 : index
    %c0_54 = arith.constant 0 : index
    %85 = vector.load %arg6[%c9, %c0_53, %c0_54] : memref<21x8x32xf32, #tpu.memory_space<vmem>>, vector<1x8x32xf32>
    %86 = vector.shape_cast %85 : vector<1x8x32xf32> to vector<8x32xf32>
    %cst_55 = arith.constant dense<0.000000e+00> : vector<8xf32>
    %87 = vector.multi_reduction <add>, %82, %cst_55 [1] : vector<8x32xf32> to vector<8xf32>
    %88 = vector.shape_cast %87 : vector<8xf32> to vector<8x1xf32>
    %cst_56 = arith.constant 3.200000e+01 : f32
    %89 = vector.broadcast %cst_56 : f32 to vector<8x1xf32>
    %90 = arith.divf %88, %89 : vector<8x1xf32>
    %91 = vector.broadcast %90 : vector<8x1xf32> to vector<8x32xf32>
    %92 = arith.subf %82, %91 : vector<8x32xf32>
    %93 = arith.mulf %92, %92 : vector<8x32xf32>
    %cst_57 = arith.constant dense<0.000000e+00> : vector<8xf32>
    %94 = vector.multi_reduction <add>, %93, %cst_57 [1] : vector<8x32xf32> to vector<8xf32>
    %95 = vector.shape_cast %94 : vector<8xf32> to vector<8x1xf32>
    %cst_58 = arith.constant 3.200000e+01 : f32
    %96 = vector.broadcast %cst_58 : f32 to vector<8x1xf32>
    %97 = arith.divf %95, %96 : vector<8x1xf32>
    %98 = vector.broadcast %90 : vector<8x1xf32> to vector<8x32xf32>
    %99 = arith.subf %82, %98 : vector<8x32xf32>
    %cst_59 = arith.constant 9.99999974E-6 : f32
    %100 = vector.broadcast %cst_59 : f32 to vector<8x1xf32>
    %101 = arith.addf %97, %100 : vector<8x1xf32>
    %102 = math.rsqrt %101 : vector<8x1xf32>
    %103 = vector.broadcast %102 : vector<8x1xf32> to vector<8x32xf32>
    %104 = arith.mulf %99, %103 : vector<8x32xf32>
    %105 = arith.mulf %104, %84 : vector<8x32xf32>
    %106 = arith.addf %105, %86 : vector<8x32xf32>
    %c0_60 = arith.constant 0 : index
    %c0_61 = arith.constant 0 : index
    %c0_62 = arith.constant 0 : index
    %107 = vector.load %arg10[%c0_60, %c0_61, %c0_62] : memref<2x32x64xf32, #tpu.memory_space<vmem>>, vector<1x32x64xf32>
    %108 = vector.shape_cast %107 : vector<1x32x64xf32> to vector<32x64xf32>
    %cst_63 = arith.constant dense<0.000000e+00> : vector<8x64xf32>
    %109 = tpu.matmul %106, %108, %cst_63 {dimension_numbers = #tpu.dot_dimension_numbers<[1], [0], [0], [1], [0, 0, 1, 1], [], []>} : vector<8x32xf32>, vector<32x64xf32>, vector<8x64xf32> -> vector<8x64xf32>
    %c0_64 = arith.constant 0 : index
    %c0_65 = arith.constant 0 : index
    %c0_66 = arith.constant 0 : index
    %110 = vector.load %arg7[%c0_64, %c0_65, %c0_66] : memref<2x8x64xf32, #tpu.memory_space<vmem>>, vector<1x8x64xf32>
    %111 = vector.shape_cast %110 : vector<1x8x64xf32> to vector<8x64xf32>
    %112 = arith.addf %109, %111 : vector<8x64xf32>
    %113 = arith.mulf %112, %112 : vector<8x64xf32>
    %114 = arith.mulf %112, %113 : vector<8x64xf32>
    %cst_67 = arith.constant 4.471500e-02 : f32
    %115 = vector.broadcast %cst_67 : f32 to vector<8x64xf32>
    %116 = arith.mulf %115, %114 : vector<8x64xf32>
    %117 = arith.addf %112, %116 : vector<8x64xf32>
    %cst_68 = arith.constant 0.797884583 : f32
    %118 = vector.broadcast %cst_68 : f32 to vector<8x64xf32>
    %119 = arith.mulf %118, %117 : vector<8x64xf32>
    %120 = math.tanh %119 : vector<8x64xf32>
    %cst_69 = arith.constant 1.000000e+00 : f32
    %121 = vector.broadcast %cst_69 : f32 to vector<8x64xf32>
    %122 = arith.addf %121, %120 : vector<8x64xf32>
    %cst_70 = arith.constant 5.000000e-01 : f32
    %123 = vector.broadcast %cst_70 : f32 to vector<8x64xf32>
    %124 = arith.mulf %123, %122 : vector<8x64xf32>
    %125 = arith.mulf %112, %124 : vector<8x64xf32>
    %c0_71 = arith.constant 0 : index
    %c0_72 = arith.constant 0 : index
    %c0_73 = arith.constant 0 : index
    %126 = vector.load %arg11[%c0_71, %c0_72, %c0_73] : memref<2x64x32xf32, #tpu.memory_space<vmem>>, vector<1x64x32xf32>
    %127 = vector.shape_cast %126 : vector<1x64x32xf32> to vector<64x32xf32>
    %cst_74 = arith.constant dense<0.000000e+00> : vector<8x32xf32>
    %128 = tpu.matmul %125, %127, %cst_74 {dimension_numbers = #tpu.dot_dimension_numbers<[1], [0], [0], [1], [0, 0, 1, 1], [], []>} : vector<8x64xf32>, vector<64x32xf32>, vector<8x32xf32> -> vector<8x32xf32>
    %c7 = arith.constant 7 : index
    %c0_75 = arith.constant 0 : index
    %c0_76 = arith.constant 0 : index
    %129 = vector.load %arg6[%c7, %c0_75, %c0_76] : memref<21x8x32xf32, #tpu.memory_space<vmem>>, vector<1x8x32xf32>
    %130 = vector.shape_cast %129 : vector<1x8x32xf32> to vector<8x32xf32>
    %131 = arith.addf %128, %130 : vector<8x32xf32>
    %132 = arith.addf %106, %131 : vector<8x32xf32>
    %c10 = arith.constant 10 : index
    %c0_77 = arith.constant 0 : index
    %c0_78 = arith.constant 0 : index
    %133 = vector.load %arg6[%c10, %c0_77, %c0_78] : memref<21x8x32xf32, #tpu.memory_space<vmem>>, vector<1x8x32xf32>
    %134 = vector.shape_cast %133 : vector<1x8x32xf32> to vector<8x32xf32>
    %c11 = arith.constant 11 : index
    %c0_79 = arith.constant 0 : index
    %c0_80 = arith.constant 0 : index
    %135 = vector.load %arg6[%c11, %c0_79, %c0_80] : memref<21x8x32xf32, #tpu.memory_space<vmem>>, vector<1x8x32xf32>
    %136 = vector.shape_cast %135 : vector<1x8x32xf32> to vector<8x32xf32>
    %cst_81 = arith.constant dense<0.000000e+00> : vector<8xf32>
    %137 = vector.multi_reduction <add>, %132, %cst_81 [1] : vector<8x32xf32> to vector<8xf32>
    %138 = vector.shape_cast %137 : vector<8xf32> to vector<8x1xf32>
    %cst_82 = arith.constant 3.200000e+01 : f32
    %139 = vector.broadcast %cst_82 : f32 to vector<8x1xf32>
    %140 = arith.divf %138, %139 : vector<8x1xf32>
    %141 = vector.broadcast %140 : vector<8x1xf32> to vector<8x32xf32>
    %142 = arith.subf %132, %141 : vector<8x32xf32>
    %143 = arith.mulf %142, %142 : vector<8x32xf32>
    %cst_83 = arith.constant dense<0.000000e+00> : vector<8xf32>
    %144 = vector.multi_reduction <add>, %143, %cst_83 [1] : vector<8x32xf32> to vector<8xf32>
    %145 = vector.shape_cast %144 : vector<8xf32> to vector<8x1xf32>
    %cst_84 = arith.constant 3.200000e+01 : f32
    %146 = vector.broadcast %cst_84 : f32 to vector<8x1xf32>
    %147 = arith.divf %145, %146 : vector<8x1xf32>
    %148 = vector.broadcast %140 : vector<8x1xf32> to vector<8x32xf32>
    %149 = arith.subf %132, %148 : vector<8x32xf32>
    %cst_85 = arith.constant 9.99999974E-6 : f32
    %150 = vector.broadcast %cst_85 : f32 to vector<8x1xf32>
    %151 = arith.addf %147, %150 : vector<8x1xf32>
    %152 = math.rsqrt %151 : vector<8x1xf32>
    %153 = vector.broadcast %152 : vector<8x1xf32> to vector<8x32xf32>
    %154 = arith.mulf %149, %153 : vector<8x32xf32>
    %155 = arith.mulf %154, %134 : vector<8x32xf32>
    %156 = arith.addf %155, %136 : vector<8x32xf32>
    %c1_86 = arith.constant 1 : index
    %c0_87 = arith.constant 0 : index
    %c0_88 = arith.constant 0 : index
    %c0_89 = arith.constant 0 : index
    %157 = vector.load %arg9[%c1_86, %c0_87, %c0_88, %c0_89] : memref<2x4x32x32xf32, #tpu.memory_space<vmem>>, vector<1x1x32x32xf32>
    %158 = vector.shape_cast %157 : vector<1x1x32x32xf32> to vector<32x32xf32>
    %cst_90 = arith.constant dense<0.000000e+00> : vector<8x32xf32>
    %159 = tpu.matmul %156, %158, %cst_90 {dimension_numbers = #tpu.dot_dimension_numbers<[1], [0], [0], [1], [0, 0, 1, 1], [], []>} : vector<8x32xf32>, vector<32x32xf32>, vector<8x32xf32> -> vector<8x32xf32>
    %c12 = arith.constant 12 : index
    %c0_91 = arith.constant 0 : index
    %c0_92 = arith.constant 0 : index
    %160 = vector.load %arg6[%c12, %c0_91, %c0_92] : memref<21x8x32xf32, #tpu.memory_space<vmem>>, vector<1x8x32xf32>
    %161 = vector.shape_cast %160 : vector<1x8x32xf32> to vector<8x32xf32>
    %162 = arith.addf %159, %161 : vector<8x32xf32>
    %c1_93 = arith.constant 1 : index
    %c1_94 = arith.constant 1 : index
    %c0_95 = arith.constant 0 : index
    %c0_96 = arith.constant 0 : index
    %163 = vector.load %arg9[%c1_93, %c1_94, %c0_95, %c0_96] : memref<2x4x32x32xf32, #tpu.memory_space<vmem>>, vector<1x1x32x32xf32>
    %164 = vector.shape_cast %163 : vector<1x1x32x32xf32> to vector<32x32xf32>
    %cst_97 = arith.constant dense<0.000000e+00> : vector<8x32xf32>
    %165 = tpu.matmul %156, %164, %cst_97 {dimension_numbers = #tpu.dot_dimension_numbers<[1], [0], [0], [1], [0, 0, 1, 1], [], []>} : vector<8x32xf32>, vector<32x32xf32>, vector<8x32xf32> -> vector<8x32xf32>
    %c13 = arith.constant 13 : index
    %c0_98 = arith.constant 0 : index
    %c0_99 = arith.constant 0 : index
    %166 = vector.load %arg6[%c13, %c0_98, %c0_99] : memref<21x8x32xf32, #tpu.memory_space<vmem>>, vector<1x8x32xf32>
    %167 = vector.shape_cast %166 : vector<1x8x32xf32> to vector<8x32xf32>
    %168 = arith.addf %165, %167 : vector<8x32xf32>
    %c1_100 = arith.constant 1 : index
    %c2_101 = arith.constant 2 : index
    %c0_102 = arith.constant 0 : index
    %c0_103 = arith.constant 0 : index
    %169 = vector.load %arg9[%c1_100, %c2_101, %c0_102, %c0_103] : memref<2x4x32x32xf32, #tpu.memory_space<vmem>>, vector<1x1x32x32xf32>
    %170 = vector.shape_cast %169 : vector<1x1x32x32xf32> to vector<32x32xf32>
    %cst_104 = arith.constant dense<0.000000e+00> : vector<8x32xf32>
    %171 = tpu.matmul %156, %170, %cst_104 {dimension_numbers = #tpu.dot_dimension_numbers<[1], [0], [0], [1], [0, 0, 1, 1], [], []>} : vector<8x32xf32>, vector<32x32xf32>, vector<8x32xf32> -> vector<8x32xf32>
    %c14 = arith.constant 14 : index
    %c0_105 = arith.constant 0 : index
    %c0_106 = arith.constant 0 : index
    %172 = vector.load %arg6[%c14, %c0_105, %c0_106] : memref<21x8x32xf32, #tpu.memory_space<vmem>>, vector<1x8x32xf32>
    %173 = vector.shape_cast %172 : vector<1x8x32xf32> to vector<8x32xf32>
    %174 = arith.addf %171, %173 : vector<8x32xf32>
    %175 = tpu.concatenate %168, %168, %168, %168 in 0 : vector<8x32xf32>, vector<8x32xf32>, vector<8x32xf32>, vector<8x32xf32> -> vector<32x32xf32>
    %176 = arith.mulf %175, %35 : vector<32x32xf32>
    %177 = tpu.concatenate %174, %174, %174, %174 in 0 : vector<8x32xf32>, vector<8x32xf32>, vector<8x32xf32>, vector<8x32xf32> -> vector<32x32xf32>
    %178 = arith.mulf %177, %35 : vector<32x32xf32>
    %cst_107 = arith.constant dense<0.000000e+00> : vector<8x32xf32>
    %179 = tpu.matmul %162, %176, %cst_107 {dimension_numbers = #tpu.dot_dimension_numbers<[1], [1], [0], [0], [0, 0, 1, 0], [], []>} : vector<8x32xf32>, vector<32x32xf32>, vector<8x32xf32> -> vector<8x32xf32>
    %cst_108 = arith.constant 0.353553385 : f32
    %180 = vector.broadcast %cst_108 : f32 to vector<8x32xf32>
    %181 = arith.mulf %179, %180 : vector<8x32xf32>
    %182 = arith.addf %181, %36 : vector<8x32xf32>
    %cst_109 = arith.constant dense<0xFF800000> : vector<8xf32>
    %183 = vector.multi_reduction <maximumf>, %182, %cst_109 [1] : vector<8x32xf32> to vector<8xf32>
    %184 = vector.shape_cast %183 : vector<8xf32> to vector<8x1xf32>
    %185 = vector.broadcast %184 : vector<8x1xf32> to vector<8x32xf32>
    %186 = arith.subf %182, %185 : vector<8x32xf32>
    %187 = math.exp %186 : vector<8x32xf32>
    %cst_110 = arith.constant dense<0.000000e+00> : vector<8x32xf32>
    %188 = tpu.matmul %187, %37, %cst_110 {dimension_numbers = #tpu.dot_dimension_numbers<[1], [0], [0], [1], [0, 0, 1, 1], [], []>} : vector<8x32xf32>, vector<32x32xf32>, vector<8x32xf32> -> vector<8x32xf32>
    %189 = tpu.reciprocal %188 {approx = true} : vector<8x32xf32> -> vector<8x32xf32>
    %190 = arith.mulf %187, %189 : vector<8x32xf32>
    %cst_111 = arith.constant dense<0.000000e+00> : vector<8x32xf32>
    %191 = tpu.matmul %190, %178, %cst_111 {dimension_numbers = #tpu.dot_dimension_numbers<[1], [0], [0], [1], [0, 0, 1, 1], [], []>} : vector<8x32xf32>, vector<32x32xf32>, vector<8x32xf32> -> vector<8x32xf32>
    %c1_112 = arith.constant 1 : index
    %c3_113 = arith.constant 3 : index
    %c0_114 = arith.constant 0 : index
    %c0_115 = arith.constant 0 : index
    %192 = vector.load %arg9[%c1_112, %c3_113, %c0_114, %c0_115] : memref<2x4x32x32xf32, #tpu.memory_space<vmem>>, vector<1x1x32x32xf32>
    %193 = vector.shape_cast %192 : vector<1x1x32x32xf32> to vector<32x32xf32>
    %cst_116 = arith.constant dense<0.000000e+00> : vector<8x32xf32>
    %194 = tpu.matmul %191, %193, %cst_116 {dimension_numbers = #tpu.dot_dimension_numbers<[1], [0], [0], [1], [0, 0, 1, 1], [], []>} : vector<8x32xf32>, vector<32x32xf32>, vector<8x32xf32> -> vector<8x32xf32>
    %c15 = arith.constant 15 : index
    %c0_117 = arith.constant 0 : index
    %c0_118 = arith.constant 0 : index
    %195 = vector.load %arg6[%c15, %c0_117, %c0_118] : memref<21x8x32xf32, #tpu.memory_space<vmem>>, vector<1x8x32xf32>
    %196 = vector.shape_cast %195 : vector<1x8x32xf32> to vector<8x32xf32>
    %197 = arith.addf %194, %196 : vector<8x32xf32>
    %198 = vector.extract_strided_slice %0 {offsets = [0, 4], sizes = [8, 1], strides = [1, 1]} : vector<8x8xf32> to vector<8x1xf32>
    %199 = vector.broadcast %198 : vector<8x1xf32> to vector<8x32xf32>
    %200 = arith.mulf %197, %199 : vector<8x32xf32>
    %201 = arith.addf %156, %200 : vector<8x32xf32>
    %c17 = arith.constant 17 : index
    %c0_119 = arith.constant 0 : index
    %c0_120 = arith.constant 0 : index
    %202 = vector.load %arg6[%c17, %c0_119, %c0_120] : memref<21x8x32xf32, #tpu.memory_space<vmem>>, vector<1x8x32xf32>
    %203 = vector.shape_cast %202 : vector<1x8x32xf32> to vector<8x32xf32>
    %c18 = arith.constant 18 : index
    %c0_121 = arith.constant 0 : index
    %c0_122 = arith.constant 0 : index
    %204 = vector.load %arg6[%c18, %c0_121, %c0_122] : memref<21x8x32xf32, #tpu.memory_space<vmem>>, vector<1x8x32xf32>
    %205 = vector.shape_cast %204 : vector<1x8x32xf32> to vector<8x32xf32>
    %cst_123 = arith.constant dense<0.000000e+00> : vector<8xf32>
    %206 = vector.multi_reduction <add>, %201, %cst_123 [1] : vector<8x32xf32> to vector<8xf32>
    %207 = vector.shape_cast %206 : vector<8xf32> to vector<8x1xf32>
    %cst_124 = arith.constant 3.200000e+01 : f32
    %208 = vector.broadcast %cst_124 : f32 to vector<8x1xf32>
    %209 = arith.divf %207, %208 : vector<8x1xf32>
    %210 = vector.broadcast %209 : vector<8x1xf32> to vector<8x32xf32>
    %211 = arith.subf %201, %210 : vector<8x32xf32>
    %212 = arith.mulf %211, %211 : vector<8x32xf32>
    %cst_125 = arith.constant dense<0.000000e+00> : vector<8xf32>
    %213 = vector.multi_reduction <add>, %212, %cst_125 [1] : vector<8x32xf32> to vector<8xf32>
    %214 = vector.shape_cast %213 : vector<8xf32> to vector<8x1xf32>
    %cst_126 = arith.constant 3.200000e+01 : f32
    %215 = vector.broadcast %cst_126 : f32 to vector<8x1xf32>
    %216 = arith.divf %214, %215 : vector<8x1xf32>
    %217 = vector.broadcast %209 : vector<8x1xf32> to vector<8x32xf32>
    %218 = arith.subf %201, %217 : vector<8x32xf32>
    %cst_127 = arith.constant 9.99999974E-6 : f32
    %219 = vector.broadcast %cst_127 : f32 to vector<8x1xf32>
    %220 = arith.addf %216, %219 : vector<8x1xf32>
    %221 = math.rsqrt %220 : vector<8x1xf32>
    %222 = vector.broadcast %221 : vector<8x1xf32> to vector<8x32xf32>
    %223 = arith.mulf %218, %222 : vector<8x32xf32>
    %224 = arith.mulf %223, %203 : vector<8x32xf32>
    %225 = arith.addf %224, %205 : vector<8x32xf32>
    %c1_128 = arith.constant 1 : index
    %c0_129 = arith.constant 0 : index
    %c0_130 = arith.constant 0 : index
    %226 = vector.load %arg10[%c1_128, %c0_129, %c0_130] : memref<2x32x64xf32, #tpu.memory_space<vmem>>, vector<1x32x64xf32>
    %227 = vector.shape_cast %226 : vector<1x32x64xf32> to vector<32x64xf32>
    %cst_131 = arith.constant dense<0.000000e+00> : vector<8x64xf32>
    %228 = tpu.matmul %225, %227, %cst_131 {dimension_numbers = #tpu.dot_dimension_numbers<[1], [0], [0], [1], [0, 0, 1, 1], [], []>} : vector<8x32xf32>, vector<32x64xf32>, vector<8x64xf32> -> vector<8x64xf32>
    %c1_132 = arith.constant 1 : index
    %c0_133 = arith.constant 0 : index
    %c0_134 = arith.constant 0 : index
    %229 = vector.load %arg7[%c1_132, %c0_133, %c0_134] : memref<2x8x64xf32, #tpu.memory_space<vmem>>, vector<1x8x64xf32>
    %230 = vector.shape_cast %229 : vector<1x8x64xf32> to vector<8x64xf32>
    %231 = arith.addf %228, %230 : vector<8x64xf32>
    %232 = arith.mulf %231, %231 : vector<8x64xf32>
    %233 = arith.mulf %231, %232 : vector<8x64xf32>
    %cst_135 = arith.constant 4.471500e-02 : f32
    %234 = vector.broadcast %cst_135 : f32 to vector<8x64xf32>
    %235 = arith.mulf %234, %233 : vector<8x64xf32>
    %236 = arith.addf %231, %235 : vector<8x64xf32>
    %cst_136 = arith.constant 0.797884583 : f32
    %237 = vector.broadcast %cst_136 : f32 to vector<8x64xf32>
    %238 = arith.mulf %237, %236 : vector<8x64xf32>
    %239 = math.tanh %238 : vector<8x64xf32>
    %cst_137 = arith.constant 1.000000e+00 : f32
    %240 = vector.broadcast %cst_137 : f32 to vector<8x64xf32>
    %241 = arith.addf %240, %239 : vector<8x64xf32>
    %cst_138 = arith.constant 5.000000e-01 : f32
    %242 = vector.broadcast %cst_138 : f32 to vector<8x64xf32>
    %243 = arith.mulf %242, %241 : vector<8x64xf32>
    %244 = arith.mulf %231, %243 : vector<8x64xf32>
    %c1_139 = arith.constant 1 : index
    %c0_140 = arith.constant 0 : index
    %c0_141 = arith.constant 0 : index
    %245 = vector.load %arg11[%c1_139, %c0_140, %c0_141] : memref<2x64x32xf32, #tpu.memory_space<vmem>>, vector<1x64x32xf32>
    %246 = vector.shape_cast %245 : vector<1x64x32xf32> to vector<64x32xf32>
    %cst_142 = arith.constant dense<0.000000e+00> : vector<8x32xf32>
    %247 = tpu.matmul %244, %246, %cst_142 {dimension_numbers = #tpu.dot_dimension_numbers<[1], [0], [0], [1], [0, 0, 1, 1], [], []>} : vector<8x64xf32>, vector<64x32xf32>, vector<8x32xf32> -> vector<8x32xf32>
    %c16 = arith.constant 16 : index
    %c0_143 = arith.constant 0 : index
    %c0_144 = arith.constant 0 : index
    %248 = vector.load %arg6[%c16, %c0_143, %c0_144] : memref<21x8x32xf32, #tpu.memory_space<vmem>>, vector<1x8x32xf32>
    %249 = vector.shape_cast %248 : vector<1x8x32xf32> to vector<8x32xf32>
    %250 = arith.addf %247, %249 : vector<8x32xf32>
    %251 = arith.addf %225, %250 : vector<8x32xf32>
    %c19 = arith.constant 19 : index
    %c0_145 = arith.constant 0 : index
    %c0_146 = arith.constant 0 : index
    %252 = vector.load %arg6[%c19, %c0_145, %c0_146] : memref<21x8x32xf32, #tpu.memory_space<vmem>>, vector<1x8x32xf32>
    %253 = vector.shape_cast %252 : vector<1x8x32xf32> to vector<8x32xf32>
    %c20 = arith.constant 20 : index
    %c0_147 = arith.constant 0 : index
    %c0_148 = arith.constant 0 : index
    %254 = vector.load %arg6[%c20, %c0_147, %c0_148] : memref<21x8x32xf32, #tpu.memory_space<vmem>>, vector<1x8x32xf32>
    %255 = vector.shape_cast %254 : vector<1x8x32xf32> to vector<8x32xf32>
    %cst_149 = arith.constant dense<0.000000e+00> : vector<8xf32>
    %256 = vector.multi_reduction <add>, %251, %cst_149 [1] : vector<8x32xf32> to vector<8xf32>
    %257 = vector.shape_cast %256 : vector<8xf32> to vector<8x1xf32>
    %cst_150 = arith.constant 3.200000e+01 : f32
    %258 = vector.broadcast %cst_150 : f32 to vector<8x1xf32>
    %259 = arith.divf %257, %258 : vector<8x1xf32>
    %260 = vector.broadcast %259 : vector<8x1xf32> to vector<8x32xf32>
    %261 = arith.subf %251, %260 : vector<8x32xf32>
    %262 = arith.mulf %261, %261 : vector<8x32xf32>
    %cst_151 = arith.constant dense<0.000000e+00> : vector<8xf32>
    %263 = vector.multi_reduction <add>, %262, %cst_151 [1] : vector<8x32xf32> to vector<8xf32>
    %264 = vector.shape_cast %263 : vector<8xf32> to vector<8x1xf32>
    %cst_152 = arith.constant 3.200000e+01 : f32
    %265 = vector.broadcast %cst_152 : f32 to vector<8x1xf32>
    %266 = arith.divf %264, %265 : vector<8x1xf32>
    %267 = vector.broadcast %259 : vector<8x1xf32> to vector<8x32xf32>
    %268 = arith.subf %251, %267 : vector<8x32xf32>
    %cst_153 = arith.constant 9.99999974E-6 : f32
    %269 = vector.broadcast %cst_153 : f32 to vector<8x1xf32>
    %270 = arith.addf %266, %269 : vector<8x1xf32>
    %271 = math.rsqrt %270 : vector<8x1xf32>
    %272 = vector.broadcast %271 : vector<8x1xf32> to vector<8x32xf32>
    %273 = arith.mulf %268, %272 : vector<8x32xf32>
    %274 = arith.mulf %273, %253 : vector<8x32xf32>
    %275 = arith.addf %274, %255 : vector<8x32xf32>
    %c1_154 = arith.constant 1 : index
    %c0_155 = arith.constant 0 : index
    %c0_156 = arith.constant 0 : index
    %276 = vector.load %arg6[%c1_154, %c0_155, %c0_156] : memref<21x8x32xf32, #tpu.memory_space<vmem>>, vector<1x8x32xf32>
    %277 = vector.shape_cast %276 : vector<1x8x32xf32> to vector<8x32xf32>
    %c2_157 = arith.constant 2 : index
    %c0_158 = arith.constant 0 : index
    %c0_159 = arith.constant 0 : index
    %278 = vector.load %arg6[%c2_157, %c0_158, %c0_159] : memref<21x8x32xf32, #tpu.memory_space<vmem>>, vector<1x8x32xf32>
    %279 = vector.shape_cast %278 : vector<1x8x32xf32> to vector<8x32xf32>
    %cst_160 = arith.constant dense<0.000000e+00> : vector<8xf32>
    %280 = vector.multi_reduction <add>, %275, %cst_160 [1] : vector<8x32xf32> to vector<8xf32>
    %281 = vector.shape_cast %280 : vector<8xf32> to vector<8x1xf32>
    %cst_161 = arith.constant 3.200000e+01 : f32
    %282 = vector.broadcast %cst_161 : f32 to vector<8x1xf32>
    %283 = arith.divf %281, %282 : vector<8x1xf32>
    %284 = vector.broadcast %283 : vector<8x1xf32> to vector<8x32xf32>
    %285 = arith.subf %275, %284 : vector<8x32xf32>
    %286 = arith.mulf %285, %285 : vector<8x32xf32>
    %cst_162 = arith.constant dense<0.000000e+00> : vector<8xf32>
    %287 = vector.multi_reduction <add>, %286, %cst_162 [1] : vector<8x32xf32> to vector<8xf32>
    %288 = vector.shape_cast %287 : vector<8xf32> to vector<8x1xf32>
    %cst_163 = arith.constant 3.200000e+01 : f32
    %289 = vector.broadcast %cst_163 : f32 to vector<8x1xf32>
    %290 = arith.divf %288, %289 : vector<8x1xf32>
    %291 = vector.broadcast %283 : vector<8x1xf32> to vector<8x32xf32>
    %292 = arith.subf %275, %291 : vector<8x32xf32>
    %cst_164 = arith.constant 9.99999974E-6 : f32
    %293 = vector.broadcast %cst_164 : f32 to vector<8x1xf32>
    %294 = arith.addf %290, %293 : vector<8x1xf32>
    %295 = math.rsqrt %294 : vector<8x1xf32>
    %296 = vector.broadcast %295 : vector<8x1xf32> to vector<8x32xf32>
    %297 = arith.mulf %292, %296 : vector<8x32xf32>
    %298 = arith.mulf %297, %277 : vector<8x32xf32>
    %299 = arith.addf %298, %279 : vector<8x32xf32>
    %c0_165 = arith.constant 0 : index
    %c0_166 = arith.constant 0 : index
    %300 = vector.load %arg12[%c0_165, %c0_166] : memref<32x128xf32, #tpu.memory_space<vmem>>, vector<32x128xf32>
    %cst_167 = arith.constant dense<0.000000e+00> : vector<8x128xf32>
    %301 = tpu.matmul %299, %300, %cst_167 {dimension_numbers = #tpu.dot_dimension_numbers<[1], [0], [0], [1], [0, 0, 1, 1], [], []>} : vector<8x32xf32>, vector<32x128xf32>, vector<8x128xf32> -> vector<8x128xf32>
    %c0_168 = arith.constant 0 : index
    %c0_169 = arith.constant 0 : index
    %302 = vector.load %arg8[%c0_168, %c0_169] : memref<8x128xf32, #tpu.memory_space<vmem>>, vector<8x128xf32>
    %303 = arith.addf %301, %302 : vector<8x128xf32>
    %304 = vector.broadcast %2 : vector<8x1xf32> to vector<8x128xf32>
    %305 = arith.subf %303, %304 : vector<8x128xf32>
    %306 = vector.broadcast %3 : vector<8x1xf32> to vector<8x128xf32>
    %307 = arith.mulf %305, %306 : vector<8x128xf32>
    %308 = vector.broadcast %21 : vector<8x1xf32> to vector<8x128xf32>
    %309 = arith.mulf %307, %308 : vector<8x128xf32>
    %310 = vector.broadcast %8 : vector<8x1xf32> to vector<8x128xf32>
    %311 = arith.addf %309, %310 : vector<8x128xf32>
    %c0_170 = arith.constant 0 : index
    %c0_171 = arith.constant 0 : index
    %312 = vector.load %arg13[%c0_170, %c0_171] : memref<8x128xf32, #tpu.memory_space<vmem>>, vector<8x128xf32>
    tpu.vector_store %arg13[%c0_170, %c0_171], %311 {strides = array<i32>} : memref<8x128xf32, #tpu.memory_space<vmem>>, vector<8x128xf32>,
    return
  }
}

</mosaic_0001>

<llo_original>
// kernel: tpu_custom_call.1
$region0: #{tpu_custom_call.1}
  #allocation0 [shape = 'u32[]', space=smem, size = 0x4, offset = 0x4, fixed_abs, tag = 'smem constant byte address 0x4 - core index']
  #allocation1 [shape = 'u32[144,128]{1,0:T(1,128)}', space=vmem, size = 0x12000, scoped, tag = 'internal scratch']
  %s0 = inlined_call_operand.hbm [shape: f32[8,16], index: 0, kind: input, shape index: {}]
  %s1 = inlined_call_operand.hbm [shape: f32[8,8], index: 1, kind: input, shape index: {}]
  %s2 = inlined_call_operand.vmem [shape: f32[32,32], index: 2, kind: input, shape index: {}]
  %s3 = inlined_call_operand.hbm [shape: f32[8,32], index: 3, kind: input, shape index: {}]
  %s4 = inlined_call_operand.hbm [shape: f32[32,32], index: 4, kind: input, shape index: {}]
  %s5 = inlined_call_operand.hbm [shape: f32[16,32], index: 5, kind: input, shape index: {}]
  %s6 = inlined_call_operand.vmem [shape: f32[21,8,32], index: 6, kind: input, shape index: {}]
  %s7 = inlined_call_operand.hbm [shape: f32[2,8,64], index: 7, kind: input, shape index: {}]
  %s8 = inlined_call_operand.hbm [shape: f32[8,128], index: 8, kind: input, shape index: {}]
  %s9 = inlined_call_operand.hbm [shape: f32[2,4,32,32], index: 9, kind: input, shape index: {}]
  %s10 = inlined_call_operand.hbm [shape: f32[2,32,64], index: 10, kind: input, shape index: {}]
  %s11 = inlined_call_operand.vmem [shape: f32[2,64,32], index: 11, kind: input, shape index: {}]
  %s12 = inlined_call_operand.vmem [shape: f32[32,128], index: 12, kind: input, shape index: {}]
  %s13 = inlined_call_operand.hbm [shape: f32[8,128], index: 13, kind: output, shape index: {}]
  %s14 = sld [smem:[#allocation0]]
  $region98: #{tpu_custom_call.1} parent=0
    _
  %s16 = ssub.s32 1, %s14
  %s17 = scalar_select 0, %s16, %s14
  $region1: #{tpu_custom_call.1} parent=0
    #allocation2 [shape = 'u8[4096]{0}', space=vmem, size = 0x1000, scoped, tag = 'input window, operand 0, single buffered']
    #allocation3 [shape = 's32[1]{0}', space=sflag, size = 0x4, scoped, tag = 'scoped memory for tpu_custom_call.1']
    #allocation4 [shape = 's32[1]{0}', space=sflag, size = 0x4, scoped, tag = 'scoped memory for tpu_custom_call.1']
    #allocation5 [shape = 'u8[4096]{0}', space=vmem, size = 0x1000, scoped, tag = 'input window, operand 1, single buffered']
    #allocation6 [shape = 's32[1]{0}', space=sflag, size = 0x4, scoped, tag = 'scoped memory for tpu_custom_call.1']
    #allocation7 [shape = 'u8[4096]{0}', space=vmem, size = 0x1000, scoped, tag = 'input window, operand 3, single buffered']
    #allocation8 [shape = 'u8[16384]{0}', space=vmem, size = 0x4000, scoped, tag = 'input window, operand 4, single buffered']
    #allocation9 [shape = 's32[1]{0}', space=sflag, size = 0x4, scoped, tag = 'scoped memory for tpu_custom_call.1']
    #allocation10 [shape = 'u8[8192]{0}', space=vmem, size = 0x2000, scoped, tag = 'input window, operand 5, single buffered']
    #allocation11 [shape = 'u8[8192]{0}', space=vmem, size = 0x2000, scoped, tag = 'input window, operand 7, single buffered']
    #allocation12 [shape = 's32[1]{0}', space=sflag, size = 0x4, scoped, tag = 'scoped memory for tpu_custom_call.1']
    #allocation13 [shape = 'u8[4096]{0}', space=vmem, size = 0x1000, scoped, tag = 'input window, operand 8, single buffered']
    #allocation14 [shape = 'u8[131072]{0}', space=vmem, size = 0x20000, scoped, tag = 'input window, operand 9, single buffered']
    #allocation15 [shape = 's32[1]{0}', space=sflag, size = 0x4, scoped, tag = 'scoped memory for tpu_custom_call.1']
    #allocation16 [shape = 'u8[32768]{0}', space=vmem, size = 0x8000, scoped, tag = 'input window, operand 10, single buffered']
    #allocation17 [shape = 'u8[4096]{0}', space=vmem, size = 0x1000, scoped, tag = 'output window, operand 0, single buffered']
    %18 = vsyncpa [#allocation3], 0
    %19 = vsyncpa [#allocation6], 0
    %20 = vsyncpa [#allocation9], 0
    %21 = vsyncpa [#allocation12], 0
    %22 = vsyncpa [#allocation15], 0
    %23 = vsyncpa [#allocation4], 0
    // Predicated region
    $region2: #{tpu_custom_call.1} parent=1 // pred_check
      _
    $region3: #{tpu_custom_call.1} parent=1 // pred_check_branch
      %25 = sbr.rel (0) target = $region5
    $region4: #{tpu_custom_call.1} parent=1 // pred_region
      %s27 = ssub.s32 128, 128
      %28 = vsyncadd [#allocation3], %s27
      %s30 = sshll.u32 [#allocation2], 4
      %s31 = int_to_ptr.vmem [resolvable:$true] %s30
      %33 = dma.hbm_to_vmem [thread:$0]  %s0, 128, %s31, [#allocation3]
    $region5: #{tpu_custom_call.1} parent=1 // pred_fallthru
      _
    // Predicated region
    $region6: #{tpu_custom_call.1} parent=1 // pred_check
      _
    $region7: #{tpu_custom_call.1} parent=1 // pred_check_branch
      %35 = sbr.rel (0) target = $region9
    $region8: #{tpu_custom_call.1} parent=1 // pred_region
      %s37 = ssub.s32 128, 128
      %38 = vsyncadd [#allocation6], %s37
      %s40 = sshll.u32 [#allocation5], 4
      %s41 = int_to_ptr.vmem [resolvable:$true] %s40
      %43 = dma.hbm_to_vmem [thread:$0]  %s1, 128, %s41, [#allocation6]
    $region9: #{tpu_custom_call.1} parent=1 // pred_fallthru
      _
    // Predicated region
    $region10: #{tpu_custom_call.1} parent=1 // pred_check
      _
    $region11: #{tpu_custom_call.1} parent=1 // pred_check_branch
      %45 = sbr.rel (0) target = $region13
    $region12: #{tpu_custom_call.1} parent=1 // pred_region
      _
    $region13: #{tpu_custom_call.1} parent=1 // pred_fallthru
      _
    // Predicated region
    $region14: #{tpu_custom_call.1} parent=1 // pred_check
      _
    $region15: #{tpu_custom_call.1} parent=1 // pred_check_branch
      %47 = sbr.rel (0) target = $region17
    $region16: #{tpu_custom_call.1} parent=1 // pred_region
      %s49 = ssub.s32 128, 128
      %50 = vsyncadd [#allocation6], %s49
      %s52 = sshll.u32 [#allocation7], 4
      %s53 = int_to_ptr.vmem [resolvable:$true] %s52
      %55 = dma.hbm_to_vmem [thread:$0]  %s3, 128, %s53, [#allocation6]
    $region17: #{tpu_custom_call.1} parent=1 // pred_fallthru
      _
    // Predicated region
    $region18: #{tpu_custom_call.1} parent=1 // pred_check
      _
    $region19: #{tpu_custom_call.1} parent=1 // pred_check_branch
      %57 = sbr.rel (0) target = $region21
    $region20: #{tpu_custom_call.1} parent=1 // pred_region
      %s59 = ssub.s32 512, 512
      %60 = vsyncadd [#allocation9], %s59
      %s61 = sshll.u32 [#allocation8], 4
      %s62 = int_to_ptr.vmem [resolvable:$true] %s61
      %67 = dma.hbm_to_vmem [thread:$0]  %s4, 512, %s62, [#allocation9], 128, 128, 8
    $region21: #{tpu_custom_call.1} parent=1 // pred_fallthru
      _
    // Predicated region
    $region22: #{tpu_custom_call.1} parent=1 // pred_check
      _
    $region23: #{tpu_custom_call.1} parent=1 // pred_check_branch
      %69 = sbr.rel (0) target = $region25
    $region24: #{tpu_custom_call.1} parent=1 // pred_region
      %s71 = ssub.s32 256, 256
      %72 = vsyncadd [#allocation9], %s71
      %s73 = sshll.u32 [#allocation10], 4
      %s74 = int_to_ptr.vmem [resolvable:$true] %s73
      %79 = dma.hbm_to_vmem [thread:$0]  %s5, 256, %s74, [#allocation9], 128, 128, 8
    $region25: #{tpu_custom_call.1} parent=1 // pred_fallthru
      _
    // Predicated region
    $region26: #{tpu_custom_call.1} parent=1 // pred_check
      _
    $region27: #{tpu_custom_call.1} parent=1 // pred_check_branch
      %81 = sbr.rel (0) target = $region29
    $region28: #{tpu_custom_call.1} parent=1 // pred_region
      _
    $region29: #{tpu_custom_call.1} parent=1 // pred_fallthru
      _
    // Predicated region
    $region30: #{tpu_custom_call.1} parent=1 // pred_check
      _
    $region31: #{tpu_custom_call.1} parent=1 // pred_check_branch
      %83 = sbr.rel (0) target = $region33
    $region32: #{tpu_custom_call.1} parent=1 // pred_region
      %s85 = ssub.s32 256, 256
      %86 = vsyncadd [#allocation12], %s85
      %s87 = sshll.u32 [#allocation11], 4
      %s88 = int_to_ptr.vmem [resolvable:$true] %s87
      %93 = dma.hbm_to_vmem [thread:$0]  %s7, 256, %s88, [#allocation12], 128, 128, 8
    $region33: #{tpu_custom_call.1} parent=1 // pred_fallthru
      _
    // Predicated region
    $region34: #{tpu_custom_call.1} parent=1 // pred_check
      _
    $region35: #{tpu_custom_call.1} parent=1 // pred_check_branch
      %95 = sbr.rel (0) target = $region37
    $region36: #{tpu_custom_call.1} parent=1 // pred_region
      %s97 = ssub.s32 128, 128
      %98 = vsyncadd [#allocation12], %s97
      %s100 = sshll.u32 [#allocation13], 4
      %s101 = int_to_ptr.vmem [resolvable:$true] %s100
      %103 = dma.hbm_to_vmem [thread:$0]  %s8, 128, %s101, [#allocation12]
    $region37: #{tpu_custom_call.1} parent=1 // pred_fallthru
      _
    // Predicated region
    $region38: #{tpu_custom_call.1} parent=1 // pred_check
      _
    $region39: #{tpu_custom_call.1} parent=1 // pred_check_branch
      %105 = sbr.rel (0) target = $region41
    $region40: #{tpu_custom_call.1} parent=1 // pred_region
      %s107 = ssub.s32 4096, 4096
      %108 = vsyncadd [#allocation15], %s107
      %s109 = sshll.u32 [#allocation14], 4
      %s110 = int_to_ptr.vmem [resolvable:$true] %s109
      %115 = dma.hbm_to_vmem [thread:$0]  %s9, 4096, %s110, [#allocation15], 128, 128, 8
    $region41: #{tpu_custom_call.1} parent=1 // pred_fallthru
      _
    // Predicated region
    $region42: #{tpu_custom_call.1} parent=1 // pred_check
      _
    $region43: #{tpu_custom_call.1} parent=1 // pred_check_branch
      %117 = sbr.rel (0) target = $region45
    $region44: #{tpu_custom_call.1} parent=1 // pred_region
      %s119 = ssub.s32 1024, 1024
      %120 = vsyncadd [#allocation15], %s119
      %s121 = sshll.u32 [#allocation16], 4
      %s122 = int_to_ptr.vmem [resolvable:$true] %s121
      %127 = dma.hbm_to_vmem [thread:$0]  %s10, 1024, %s122, [#allocation15], 128, 128, 8
    $region45: #{tpu_custom_call.1} parent=1 // pred_fallthru
      _
    // Predicated region
    $region46: #{tpu_custom_call.1} parent=1 // pred_check
      _
    $region47: #{tpu_custom_call.1} parent=1 // pred_check_branch
      %129 = sbr.rel (0) target = $region49
    $region48: #{tpu_custom_call.1} parent=1 // pred_region
      _
    $region49: #{tpu_custom_call.1} parent=1 // pred_fallthru
      _
    // Predicated region
    $region50: #{tpu_custom_call.1} parent=1 // pred_check
      _
    $region51: #{tpu_custom_call.1} parent=1 // pred_check_branch
      %131 = sbr.rel (0) target = $region53
    $region52: #{tpu_custom_call.1} parent=1 // pred_region
      _
    $region53: #{tpu_custom_call.1} parent=1 // pred_fallthru
      _
    // Predicated region
    $region54: #{tpu_custom_call.1} parent=1 // pred_check
      _
    $region55: #{tpu_custom_call.1} parent=1 // pred_check_branch
      %133 = sbr.rel (0) target = $region57
    $region56: #{tpu_custom_call.1} parent=1 // pred_region
      %134 = dma.done [#allocation3], 128
    $region57: #{tpu_custom_call.1} parent=1 // pred_fallthru
      _
    // Predicated region
    $region58: #{tpu_custom_call.1} parent=1 // pred_check
      _
    $region59: #{tpu_custom_call.1} parent=1 // pred_check_branch
      %136 = sbr.rel (0) target = $region61
    $region60: #{tpu_custom_call.1} parent=1 // pred_region
      %137 = dma.done [#allocation6], 128
    $region61: #{tpu_custom_call.1} parent=1 // pred_fallthru
      _
    // Predicated region
    $region62: #{tpu_custom_call.1} parent=1 // pred_check
      _
    $region63: #{tpu_custom_call.1} parent=1 // pred_check_branch
      %139 = sbr.rel (0) target = $region65
    $region64: #{tpu_custom_call.1} parent=1 // pred_region
      %140 = dma.done [#allocation6], 128
    $region65: #{tpu_custom_call.1} parent=1 // pred_fallthru
      _
    // Predicated region
    $region66: #{tpu_custom_call.1} parent=1 // pred_check
      _
    $region67: #{tpu_custom_call.1} parent=1 // pred_check_branch
      %142 = sbr.rel (0) target = $region69
    $region68: #{tpu_custom_call.1} parent=1 // pred_region
      %143 = dma.done [#allocation9], 512
    $region69: #{tpu_custom_call.1} parent=1 // pred_fallthru
      _
    // Predicated region
    $region70: #{tpu_custom_call.1} parent=1 // pred_check
      _
    $region71: #{tpu_custom_call.1} parent=1 // pred_check_branch
      %145 = sbr.rel (0) target = $region73
    $region72: #{tpu_custom_call.1} parent=1 // pred_region
      %146 = dma.done [#allocation9], 256
    $region73: #{tpu_custom_call.1} parent=1 // pred_fallthru
      _
    // Predicated region
    $region74: #{tpu_custom_call.1} parent=1 // pred_check
      _
    $region75: #{tpu_custom_call.1} parent=1 // pred_check_branch
      %148 = sbr.rel (0) target = $region77
    $region76: #{tpu_custom_call.1} parent=1 // pred_region
      %149 = dma.done [#allocation12], 256
    $region77: #{tpu_custom_call.1} parent=1 // pred_fallthru
      _
    // Predicated region
    $region78: #{tpu_custom_call.1} parent=1 // pred_check
      _
    $region79: #{tpu_custom_call.1} parent=1 // pred_check_branch
      %151 = sbr.rel (0) target = $region81
    $region80: #{tpu_custom_call.1} parent=1 // pred_region
      %152 = dma.done [#allocation12], 128
    $region81: #{tpu_custom_call.1} parent=1 // pred_fallthru
      _
    // Predicated region
    $region82: #{tpu_custom_call.1} parent=1 // pred_check
      _
    $region83: #{tpu_custom_call.1} parent=1 // pred_check_branch
      %154 = sbr.rel (0) target = $region85
    $region84: #{tpu_custom_call.1} parent=1 // pred_region
      %155 = dma.done [#allocation15], 4096
    $region85: #{tpu_custom_call.1} parent=1 // pred_fallthru
      _
    // Predicated region
    $region86: #{tpu_custom_call.1} parent=1 // pred_check
      _
    $region87: #{tpu_custom_call.1} parent=1 // pred_check_branch
      %157 = sbr.rel (0) target = $region89
    $region88: #{tpu_custom_call.1} parent=1 // pred_region
      %158 = dma.done [#allocation15], 1024
    $region89: #{tpu_custom_call.1} parent=1 // pred_fallthru
      _
    %v159 = vld [vmem:[#allocation5] sm:$0xff]
    %v160 = vld [vmem:[#allocation2] sm:$0xff]
    %vm161 = vcmask 130048
    %v162 = vsel %vm161, %v160, 0.0
    %163 = vadd.xlane.f32.xlu0 %v162
    %v164 = vpop.xlane.xlu0 %163
    %v165 = vrcp.pop 16.0
    %v166 = vmul.f32 %v164, %v165
    %v167 = vsub.f32 %v160, %v166
    %v168 = vmul.f32 %v167, %v167
    %v169 = vsel %vm161, %v168, 0.0
    %170 = vadd.xlane.f32.xlu0 %v169
    %v171 = vpop.xlane.xlu0 %170
    %v172 = vmul.f32 %v171, %v165
    %v173 = vadd.f32 %v172, 1e-05
    %v174 = vrsqrt.pop %v173
    %v175 = vmul.f32 %v173, %v174
    %v176 = vmul.f32 %v167, %v174
    %178 = vset.pattern.permute.xlu0 0
    %179 = vperm.xlu0 %178, %v159
    %v180 = vpop.permute.xlu0 %179
    %v182 = vmul.f32 %v176, %v180
    %183 = vset.pattern.permute.xlu0 1
    %184 = vperm.xlu0 %183, %v159
    %v185 = vpop.permute.xlu0 %184
    %v187 = vadd.f32 %v182, %v185
    %v188 = vld [vmem:[#allocation10] sm:$0xff]
    %v189 = vld [vmem:[#allocation10 + $0x8] sm:$0xff]
    %v190 = vld [vmem:[%s6] sm:$0xff]
    %v192 = vsel %vm161, %v187, 0
    %194 = vmatprep.subr.mxu0 0.0
    %195 = vmatpush1.msra.mxu0 %v188
    %196 = vmatprep.subr.mxu0 0.0
    %197 = vmatpush1.msra.mxu0 %v189
    %198 = vmatprep.subr.mxu0 0.0
    %199 = vmatpush1.msra.mxu0 0.0
    %200 = vmatprep.subr.mxu0 0.0
    %201 = vmatpush1.msra.mxu0 0.0
    %202 = vmatprep.subr.mxu0 0.0
    %203 = vmatpush1.msra.mxu0 0.0
    %204 = vmatprep.subr.mxu0 0.0
    %205 = vmatpush1.msra.mxu0 0.0
    %206 = vmatprep.subr.mxu0 0.0
    %207 = vmatpush1.msra.mxu0 0.0
    %208 = vmatprep.subr.mxu0 0.0
    %209 = vmatpush1.msra.mxu0 0.0
    %210 = vmatprep.subr.mxu0 0.0
    %211 = vmatpush1.msra.mxu0 0.0
    %212 = vmatprep.subr.mxu0 0.0
    %213 = vmatpush1.msra.mxu0 0.0
    %214 = vmatprep.subr.mxu0 0.0
    %215 = vmatpush1.msra.mxu0 0.0
    %216 = vmatprep.subr.mxu0 0.0
    %217 = vmatpush1.msra.mxu0 0.0
    %218 = vmatprep.subr.mxu0 0.0
    %219 = vmatpush1.msra.mxu0 0.0
    %220 = vmatprep.subr.mxu0 0.0
    %221 = vmatpush1.msra.mxu0 0.0
    %222 = vmatprep.subr.mxu0 0.0
    %223 = vmatpush1.msra.mxu0 0.0
    %224 = vmatprep.subr.mxu0 0.0
    %225 = vmatpush1.msra.mxu0 0.0
    %226 = vmatprep.subr.mxu0 0.0
    %227 = vmatpush1.msra.mxu0 0.0
    %228 = vmatprep.subr.mxu0 0.0
    %229 = vmatpush1.msra.mxu0 0.0
    %230 = vmatprep.subr.mxu0 0.0
    %231 = vmatpush1.msra.mxu0 0.0
    %232 = vmatprep.subr.mxu0 0.0
    %233 = vmatpush1.msra.mxu0 0.0
    %234 = vmatprep.subr.mxu0 0.0
    %235 = vmatpush1.msra.mxu0 0.0
    %236 = vmatprep.subr.mxu0 0.0
    %237 = vmatpush1.msra.mxu0 0.0
    %238 = vmatprep.subr.mxu0 0.0
    %239 = vmatpush1.msra.mxu0 0.0
    %240 = vmatprep.subr.mxu0 0.0
    %241 = vmatpush1.msra.mxu0 0.0
    %242 = vmatprep.subr.mxu0 0.0
    %243 = vmatpush1.msra.mxu0 0.0
    %244 = vmatprep.subr.mxu0 0.0
    %245 = vmatpush1.msra.mxu0 0.0
    %246 = vmatprep.subr.mxu0 0.0
    %247 = vmatpush1.msra.mxu0 0.0
    %248 = vmatprep.subr.mxu0 0.0
    %249 = vmatpush1.msra.mxu0 0.0
    %250 = vmatprep.subr.mxu0 0.0
    %251 = vmatpush1.msra.mxu0 0.0
    %252 = vmatprep.subr.mxu0 0.0
    %253 = vmatpush1.msra.mxu0 0.0
    %254 = vmatprep.subr.mxu0 0.0
    %255 = vmatpush1.msra.mxu0 0.0
    %256 = vmatprep.subr.mxu0 0.0
    %257 = vmatpush1.msra.mxu0 0.0
    %258 = vmatprep.mubr.f32.mxu0 0.0
    %259 = vmatmul.mubr.f32.gmra.mrb[0].mxu0 %v192
    %v260 = vpop.f32.mrb[0].mxu0
    %v261 = vadd.f32 %v190, %v260
    %v262 = vpop.f32.mrb[0].mxu0
    %263 = vdwg.mxu0
    %v264 = vld [vmem:[%s2] sm:$0xff]
    %v265 = vld [vmem:[%s2 + $0x8] sm:$0xff]
    %v266 = vld [vmem:[%s2 + $0x10] sm:$0xff]
    %v267 = vld [vmem:[%s2 + $0x18] sm:$0xff]
    %v268 = vld [vmem:[#allocation7] sm:$0xff]
    %v269 = vld [vmem:[#allocation8] sm:$0xff]
    %v270 = vld [vmem:[#allocation8 + $0x8] sm:$0xff]
    %v271 = vld [vmem:[#allocation8 + $0x10] sm:$0xff]
    %v272 = vld [vmem:[#allocation8 + $0x18] sm:$0xff]
    %v273 = vld [vmem:[#allocation14] sm:$0xff]
    %v274 = vld [vmem:[#allocation14 + $0x8] sm:$0xff]
    %v275 = vld [vmem:[#allocation14 + $0x10] sm:$0xff]
    %v276 = vld [vmem:[#allocation14 + $0x18] sm:$0xff]
    %s277 = scalar_lea.vmem %s6, 24
    %v278 = vld [vmem:[%s277] sm:$0xff]
    %vm279 = vcmask 261120
    %v281 = vsel %vm279, %v261, 0
    %283 = vmatprep.subr.mxu0 0.0
    %284 = vmatpush1.msra.mxu0 %v273
    %285 = vmatprep.subr.mxu0 0.0
    %286 = vmatpush1.msra.mxu0 %v274
    %287 = vmatprep.subr.mxu0 0.0
    %288 = vmatpush1.msra.mxu0 %v275
    %289 = vmatprep.subr.mxu0 0.0
    %290 = vmatpush1.msra.mxu0 %v276
    %291 = vmatprep.subr.mxu0 0.0
    %292 = vmatpush1.msra.mxu0 0.0
    %293 = vmatprep.subr.mxu0 0.0
    %294 = vmatpush1.msra.mxu0 0.0
    %295 = vmatprep.subr.mxu0 0.0
    %296 = vmatpush1.msra.mxu0 0.0
    %297 = vmatprep.subr.mxu0 0.0
    %298 = vmatpush1.msra.mxu0 0.0
    %299 = vmatprep.subr.mxu0 0.0
    %300 = vmatpush1.msra.mxu0 0.0
    %301 = vmatprep.subr.mxu0 0.0
    %302 = vmatpush1.msra.mxu0 0.0
    %303 = vmatprep.subr.mxu0 0.0
    %304 = vmatpush1.msra.mxu0 0.0
    %305 = vmatprep.subr.mxu0 0.0
    %306 = vmatpush1.msra.mxu0 0.0
    %307 = vmatprep.subr.mxu0 0.0
    %308 = vmatpush1.msra.mxu0 0.0
    %309 = vmatprep.subr.mxu0 0.0
    %310 = vmatpush1.msra.mxu0 0.0
    %311 = vmatprep.subr.mxu0 0.0
    %312 = vmatpush1.msra.mxu0 0.0
    %313 = vmatprep.subr.mxu0 0.0
    %314 = vmatpush1.msra.mxu0 0.0
    %315 = vmatprep.subr.mxu0 0.0
    %316 = vmatpush1.msra.mxu0 0.0
    %317 = vmatprep.subr.mxu0 0.0
    %318 = vmatpush1.msra.mxu0 0.0
    %319 = vmatprep.subr.mxu0 0.0
    %320 = vmatpush1.msra.mxu0 0.0
    %321 = vmatprep.subr.mxu0 0.0
    %322 = vmatpush1.msra.mxu0 0.0
    %323 = vmatprep.subr.mxu0 0.0
    %324 = vmatpush1.msra.mxu0 0.0
    %325 = vmatprep.subr.mxu0 0.0
    %326 = vmatpush1.msra.mxu0 0.0
    %327 = vmatprep.subr.mxu0 0.0
    %328 = vmatpush1.msra.mxu0 0.0
    %329 = vmatprep.subr.mxu0 0.0
    %330 = vmatpush1.msra.mxu0 0.0
    %331 = vmatprep.subr.mxu0 0.0
    %332 = vmatpush1.msra.mxu0 0.0
    %333 = vmatprep.subr.mxu0 0.0
    %334 = vmatpush1.msra.mxu0 0.0
    %335 = vmatprep.subr.mxu0 0.0
    %336 = vmatpush1.msra.mxu0 0.0
    %337 = vmatprep.subr.mxu0 0.0
    %338 = vmatpush1.msra.mxu0 0.0
    %339 = vmatprep.subr.mxu0 0.0
    %340 = vmatpush1.msra.mxu0 0.0
    %341 = vmatprep.subr.mxu0 0.0
    %342 = vmatpush1.msra.mxu0 0.0
    %343 = vmatprep.subr.mxu0 0.0
    %344 = vmatpush1.msra.mxu0 0.0
    %345 = vmatprep.subr.mxu0 0.0
    %346 = vmatpush1.msra.mxu0 0.0
    %347 = vmatprep.mubr.f32.mxu0 0.0
    %348 = vmatmul.mubr.f32.gmra.mrb[0].mxu0 %v281
    %v349 = vpop.f32.mrb[0].mxu0
    %v350 = vadd.f32 %v278, %v349
    %v351 = vpop.f32.mrb[0].mxu0
    %352 = vdwg.mxu0
    %s353 = scalar_lea.vmem [#allocation14], 32
    %v354 = vld [vmem:[%s353] sm:$0xff]
    %v355 = vld [vmem:[%s353 + $0x8] sm:$0xff]
    %v356 = vld [vmem:[%s353 + $0x10] sm:$0xff]
    %v357 = vld [vmem:[%s353 + $0x18] sm:$0xff]
    %s358 = scalar_lea.vmem %s6, 32
    %v359 = vld [vmem:[%s358] sm:$0xff]
    %360 = vmatprep.subr.mxu0 0.0
    %361 = vmatpush1.msra.mxu0 %v354
    %362 = vmatprep.subr.mxu0 0.0
    %363 = vmatpush1.msra.mxu0 %v355
    %364 = vmatprep.subr.mxu0 0.0
    %365 = vmatpush1.msra.mxu0 %v356
    %366 = vmatprep.subr.mxu0 0.0
    %367 = vmatpush1.msra.mxu0 %v357
    %368 = vmatprep.subr.mxu0 0.0
    %369 = vmatpush1.msra.mxu0 0.0
    %370 = vmatprep.subr.mxu0 0.0
    %371 = vmatpush1.msra.mxu0 0.0
    %372 = vmatprep.subr.mxu0 0.0
    %373 = vmatpush1.msra.mxu0 0.0
    %374 = vmatprep.subr.mxu0 0.0
    %375 = vmatpush1.msra.mxu0 0.0
    %376 = vmatprep.subr.mxu0 0.0
    %377 = vmatpush1.msra.mxu0 0.0
    %378 = vmatprep.subr.mxu0 0.0
    %379 = vmatpush1.msra.mxu0 0.0
    %380 = vmatprep.subr.mxu0 0.0
    %381 = vmatpush1.msra.mxu0 0.0
    %382 = vmatprep.subr.mxu0 0.0
    %383 = vmatpush1.msra.mxu0 0.0
    %384 = vmatprep.subr.mxu0 0.0
    %385 = vmatpush1.msra.mxu0 0.0
    %386 = vmatprep.subr.mxu0 0.0
    %387 = vmatpush1.msra.mxu0 0.0
    %388 = vmatprep.subr.mxu0 0.0
    %389 = vmatpush1.msra.mxu0 0.0
    %390 = vmatprep.subr.mxu0 0.0
    %391 = vmatpush1.msra.mxu0 0.0
    %392 = vmatprep.subr.mxu0 0.0
    %393 = vmatpush1.msra.mxu0 0.0
    %394 = vmatprep.subr.mxu0 0.0
    %395 = vmatpush1.msra.mxu0 0.0
    %396 = vmatprep.subr.mxu0 0.0
    %397 = vmatpush1.msra.mxu0 0.0
    %398 = vmatprep.subr.mxu0 0.0
    %399 = vmatpush1.msra.mxu0 0.0
    %400 = vmatprep.subr.mxu0 0.0
    %401 = vmatpush1.msra.mxu0 0.0
    %402 = vmatprep.subr.mxu0 0.0
    %403 = vmatpush1.msra.mxu0 0.0
    %404 = vmatprep.subr.mxu0 0.0
    %405 = vmatpush1.msra.mxu0 0.0
    %406 = vmatprep.subr.mxu0 0.0
    %407 = vmatpush1.msra.mxu0 0.0
    %408 = vmatprep.subr.mxu0 0.0
    %409 = vmatpush1.msra.mxu0 0.0
    %410 = vmatprep.subr.mxu0 0.0
    %411 = vmatpush1.msra.mxu0 0.0
    %412 = vmatprep.subr.mxu0 0.0
    %413 = vmatpush1.msra.mxu0 0.0
    %414 = vmatprep.subr.mxu0 0.0
    %415 = vmatpush1.msra.mxu0 0.0
    %416 = vmatprep.subr.mxu0 0.0
    %417 = vmatpush1.msra.mxu0 0.0
    %418 = vmatprep.subr.mxu0 0.0
    %419 = vmatpush1.msra.mxu0 0.0
    %420 = vmatprep.subr.mxu0 0.0
    %421 = vmatpush1.msra.mxu0 0.0
    %422 = vmatprep.subr.mxu0 0.0
    %423 = vmatpush1.msra.mxu0 0.0
    %424 = vmatprep.mubr.f32.mxu0 0.0
    %425 = vmatmul.mubr.f32.gmra.mrb[0].mxu0 %v281
    %v426 = vpop.f32.mrb[0].mxu0
    %v427 = vadd.f32 %v359, %v426
    %v428 = vpop.f32.mrb[0].mxu0
    %429 = vdwg.mxu0
    %s430 = scalar_lea.vmem [#allocation14], 64
    %v431 = vld [vmem:[%s430] sm:$0xff]
    %v432 = vld [vmem:[%s430 + $0x8] sm:$0xff]
    %v433 = vld [vmem:[%s430 + $0x10] sm:$0xff]
    %v434 = vld [vmem:[%s430 + $0x18] sm:$0xff]
    %s435 = scalar_lea.vmem %s6, 40
    %v436 = vld [vmem:[%s435] sm:$0xff]
    %437 = vmatprep.subr.mxu0 0.0
    %438 = vmatpush1.msra.mxu0 %v431
    %439 = vmatprep.subr.mxu0 0.0
    %440 = vmatpush1.msra.mxu0 %v432
    %441 = vmatprep.subr.mxu0 0.0
    %442 = vmatpush1.msra.mxu0 %v433
    %443 = vmatprep.subr.mxu0 0.0
    %444 = vmatpush1.msra.mxu0 %v434
    %445 = vmatprep.subr.mxu0 0.0
    %446 = vmatpush1.msra.mxu0 0.0
    %447 = vmatprep.subr.mxu0 0.0
    %448 = vmatpush1.msra.mxu0 0.0
    %449 = vmatprep.subr.mxu0 0.0
    %450 = vmatpush1.msra.mxu0 0.0
    %451 = vmatprep.subr.mxu0 0.0
    %452 = vmatpush1.msra.mxu0 0.0
    %453 = vmatprep.subr.mxu0 0.0
    %454 = vmatpush1.msra.mxu0 0.0
    %455 = vmatprep.subr.mxu0 0.0
    %456 = vmatpush1.msra.mxu0 0.0
    %457 = vmatprep.subr.mxu0 0.0
    %458 = vmatpush1.msra.mxu0 0.0
    %459 = vmatprep.subr.mxu0 0.0
    %460 = vmatpush1.msra.mxu0 0.0
    %461 = vmatprep.subr.mxu0 0.0
    %462 = vmatpush1.msra.mxu0 0.0
    %463 = vmatprep.subr.mxu0 0.0
    %464 = vmatpush1.msra.mxu0 0.0
    %465 = vmatprep.subr.mxu0 0.0
    %466 = vmatpush1.msra.mxu0 0.0
    %467 = vmatprep.subr.mxu0 0.0
    %468 = vmatpush1.msra.mxu0 0.0
    %469 = vmatprep.subr.mxu0 0.0
    %470 = vmatpush1.msra.mxu0 0.0
    %471 = vmatprep.subr.mxu0 0.0
    %472 = vmatpush1.msra.mxu0 0.0
    %473 = vmatprep.subr.mxu0 0.0
    %474 = vmatpush1.msra.mxu0 0.0
    %475 = vmatprep.subr.mxu0 0.0
    %476 = vmatpush1.msra.mxu0 0.0
    %477 = vmatprep.subr.mxu0 0.0
    %478 = vmatpush1.msra.mxu0 0.0
    %479 = vmatprep.subr.mxu0 0.0
    %480 = vmatpush1.msra.mxu0 0.0
    %481 = vmatprep.subr.mxu0 0.0
    %482 = vmatpush1.msra.mxu0 0.0
    %483 = vmatprep.subr.mxu0 0.0
    %484 = vmatpush1.msra.mxu0 0.0
    %485 = vmatprep.subr.mxu0 0.0
    %486 = vmatpush1.msra.mxu0 0.0
    %487 = vmatprep.subr.mxu0 0.0
    %488 = vmatpush1.msra.mxu0 0.0
    %489 = vmatprep.subr.mxu0 0.0
    %490 = vmatpush1.msra.mxu0 0.0
    %491 = vmatprep.subr.mxu0 0.0
    %492 = vmatpush1.msra.mxu0 0.0
    %493 = vmatprep.subr.mxu0 0.0
    %494 = vmatpush1.msra.mxu0 0.0
    %495 = vmatprep.subr.mxu0 0.0
    %496 = vmatpush1.msra.mxu0 0.0
    %497 = vmatprep.subr.mxu0 0.0
    %498 = vmatpush1.msra.mxu0 0.0
    %499 = vmatprep.subr.mxu0 0.0
    %500 = vmatpush1.msra.mxu0 0.0
    %501 = vmatprep.mubr.f32.mxu0 0.0
    %502 = vmatmul.mubr.f32.gmra.mrb[0].mxu0 %v281
    %v503 = vpop.f32.mrb[0].mxu0
    %v504 = vadd.f32 %v436, %v503
    %v505 = vpop.f32.mrb[0].mxu0
    %506 = vdwg.mxu0
    %v507 = vmul.f32 %v427, %v264
    %v508 = vmul.f32 %v427, %v265
    %v509 = vmul.f32 %v427, %v266
    %v510 = vmul.f32 %v427, %v267
    %v511 = vmul.f32 %v504, %v264
    %v512 = vmul.f32 %v504, %v265
    %v513 = vmul.f32 %v504, %v266
    %v514 = vmul.f32 %v504, %v267
    %v516 = vsel %vm279, %v350, 0
    %v519 = vsel %vm279, %v507, 0
    %v522 = vsel %vm279, %v508, 0
    %v525 = vsel %vm279, %v509, 0
    %v528 = vsel %vm279, %v510, 0
    %530 = vmatprep.subr.mxu0 0.0
    %531 = vmatpush1.xpose.msra.mxu0 %v519
    %532 = vmatprep.subr.mxu0 0.0
    %533 = vmatpush1.xpose.msra.mxu0 %v522
    %534 = vmatprep.subr.mxu0 0.0
    %535 = vmatpush1.xpose.msra.mxu0 %v525
    %536 = vmatprep.subr.mxu0 0.0
    %537 = vmatpush1.xpose.msra.mxu0 %v528
    %538 = vmatprep.subr.mxu0 0.0
    %539 = vmatpush1.xpose.msra.mxu0 0.0
    %540 = vmatprep.subr.mxu0 0.0
    %541 = vmatpush1.xpose.msra.mxu0 0.0
    %542 = vmatprep.subr.mxu0 0.0
    %543 = vmatpush1.xpose.msra.mxu0 0.0
    %544 = vmatprep.subr.mxu0 0.0
    %545 = vmatpush1.xpose.msra.mxu0 0.0
    %546 = vmatprep.subr.mxu0 0.0
    %547 = vmatpush1.xpose.msra.mxu0 0.0
    %548 = vmatprep.subr.mxu0 0.0
    %549 = vmatpush1.xpose.msra.mxu0 0.0
    %550 = vmatprep.subr.mxu0 0.0
    %551 = vmatpush1.xpose.msra.mxu0 0.0
    %552 = vmatprep.subr.mxu0 0.0
    %553 = vmatpush1.xpose.msra.mxu0 0.0
    %554 = vmatprep.subr.mxu0 0.0
    %555 = vmatpush1.xpose.msra.mxu0 0.0
    %556 = vmatprep.subr.mxu0 0.0
    %557 = vmatpush1.xpose.msra.mxu0 0.0
    %558 = vmatprep.subr.mxu0 0.0
    %559 = vmatpush1.xpose.msra.mxu0 0.0
    %560 = vmatprep.subr.mxu0 0.0
    %561 = vmatpush1.xpose.msra.mxu0 0.0
    %562 = vmatprep.subr.mxu0 0.0
    %563 = vmatpush1.xpose.msra.mxu0 0.0
    %564 = vmatprep.subr.mxu0 0.0
    %565 = vmatpush1.xpose.msra.mxu0 0.0
    %566 = vmatprep.subr.mxu0 0.0
    %567 = vmatpush1.xpose.msra.mxu0 0.0
    %568 = vmatprep.subr.mxu0 0.0
    %569 = vmatpush1.xpose.msra.mxu0 0.0
    %570 = vmatprep.subr.mxu0 0.0
    %571 = vmatpush1.xpose.msra.mxu0 0.0
    %572 = vmatprep.subr.mxu0 0.0
    %573 = vmatpush1.xpose.msra.mxu0 0.0
    %574 = vmatprep.subr.mxu0 0.0
    %575 = vmatpush1.xpose.msra.mxu0 0.0
    %576 = vmatprep.subr.mxu0 0.0
    %577 = vmatpush1.xpose.msra.mxu0 0.0
    %578 = vmatprep.subr.mxu0 0.0
    %579 = vmatpush1.xpose.msra.mxu0 0.0
    %580 = vmatprep.subr.mxu0 0.0
    %581 = vmatpush1.xpose.msra.mxu0 0.0
    %582 = vmatprep.subr.mxu0 0.0
    %583 = vmatpush1.xpose.msra.mxu0 0.0
    %584 = vmatprep.subr.mxu0 0.0
    %585 = vmatpush1.xpose.msra.mxu0 0.0
    %586 = vmatprep.subr.mxu0 0.0
    %587 = vmatpush1.xpose.msra.mxu0 0.0
    %588 = vmatprep.subr.mxu0 0.0
    %589 = vmatpush1.xpose.msra.mxu0 0.0
    %590 = vmatprep.subr.mxu0 0.0
    %591 = vmatpush1.xpose.msra.mxu0 0.0
    %592 = vmatprep.subr.mxu0 0.0
    %593 = vmatpush1.xpose.msra.mxu0 0.0
    %594 = vmatprep.mubr.f32.mxu0 0.0
    %595 = vmatmul.mubr.f32.gmra.mrb[0].mxu0 %v516
    %v596 = vpop.f32.mrb[0].mxu0
    %v597 = vadd.f32 0.0, %v596
    %v598 = vpop.f32.mrb[0].mxu0
    %599 = vdwg.mxu0
    %v600 = vmul.f32 %v597, 0.35355338
    %v601 = vadd.f32 %v600, %v268
    %v602 = vsel %vm279, %v601, -inf
    %603 = vmax.xlane.f32.xlu0 %v602
    %v604 = vpop.xlane.xlu0 %603
    %v605 = vsub.f32 %v601, %v604
    %v606 = vmul.f32 %v605, 1.442695
    %v607 = vpow.pop %v606
    %v609 = vsel %vm279, %v607, 0
    %611 = vmatprep.subr.mxu0 0.0
    %612 = vmatpush1.msra.mxu0 %v269
    %613 = vmatprep.subr.mxu0 0.0
    %614 = vmatpush1.msra.mxu0 %v270
    %615 = vmatprep.subr.mxu0 0.0
    %616 = vmatpush1.msra.mxu0 %v271
    %617 = vmatprep.subr.mxu0 0.0
    %618 = vmatpush1.msra.mxu0 %v272
    %619 = vmatprep.subr.mxu0 0.0
    %620 = vmatpush1.msra.mxu0 0.0
    %621 = vmatprep.subr.mxu0 0.0
    %622 = vmatpush1.msra.mxu0 0.0
    %623 = vmatprep.subr.mxu0 0.0
    %624 = vmatpush1.msra.mxu0 0.0
    %625 = vmatprep.subr.mxu0 0.0
    %626 = vmatpush1.msra.mxu0 0.0
    %627 = vmatprep.subr.mxu0 0.0
    %628 = vmatpush1.msra.mxu0 0.0
    %629 = vmatprep.subr.mxu0 0.0
    %630 = vmatpush1.msra.mxu0 0.0
    %631 = vmatprep.subr.mxu0 0.0
    %632 = vmatpush1.msra.mxu0 0.0
    %633 = vmatprep.subr.mxu0 0.0
    %634 = vmatpush1.msra.mxu0 0.0
    %635 = vmatprep.subr.mxu0 0.0
    %636 = vmatpush1.msra.mxu0 0.0
    %637 = vmatprep.subr.mxu0 0.0
    %638 = vmatpush1.msra.mxu0 0.0
    %639 = vmatprep.subr.mxu0 0.0
    %640 = vmatpush1.msra.mxu0 0.0
    %641 = vmatprep.subr.mxu0 0.0
    %642 = vmatpush1.msra.mxu0 0.0
    %643 = vmatprep.subr.mxu0 0.0
    %644 = vmatpush1.msra.mxu0 0.0
    %645 = vmatprep.subr.mxu0 0.0
    %646 = vmatpush1.msra.mxu0 0.0
    %647 = vmatprep.subr.mxu0 0.0
    %648 = vmatpush1.msra.mxu0 0.0
    %649 = vmatprep.subr.mxu0 0.0
    %650 = vmatpush1.msra.mxu0 0.0
    %651 = vmatprep.subr.mxu0 0.0
    %652 = vmatpush1.msra.mxu0 0.0
    %653 = vmatprep.subr.mxu0 0.0
    %654 = vmatpush1.msra.mxu0 0.0
    %655 = vmatprep.subr.mxu0 0.0
    %656 = vmatpush1.msra.mxu0 0.0
    %657 = vmatprep.subr.mxu0 0.0
    %658 = vmatpush1.msra.mxu0 0.0
    %659 = vmatprep.subr.mxu0 0.0
    %660 = vmatpush1.msra.mxu0 0.0
    %661 = vmatprep.subr.mxu0 0.0
    %662 = vmatpush1.msra.mxu0 0.0
    %663 = vmatprep.subr.mxu0 0.0
    %664 = vmatpush1.msra.mxu0 0.0
    %665 = vmatprep.subr.mxu0 0.0
    %666 = vmatpush1.msra.mxu0 0.0
    %667 = vmatprep.subr.mxu0 0.0
    %668 = vmatpush1.msra.mxu0 0.0
    %669 = vmatprep.subr.mxu0 0.0
    %670 = vmatpush1.msra.mxu0 0.0
    %671 = vmatprep.subr.mxu0 0.0
    %672 = vmatpush1.msra.mxu0 0.0
    %673 = vmatprep.subr.mxu0 0.0
    %674 = vmatpush1.msra.mxu0 0.0
    %675 = vmatprep.mubr.f32.mxu0 0.0
    %676 = vmatmul.mubr.f32.gmra.mrb[0].mxu0 %v609
    %v677 = vpop.f32.mrb[0].mxu0
    %v678 = vadd.f32 0.0, %v677
    %v679 = vpop.f32.mrb[0].mxu0
    %680 = vdwg.mxu0
    %v681 = vrcp.pop %v678
    %v682 = vmul.f32 %v607, %v681
    %v684 = vsel %vm279, %v682, 0
    %686 = vmatprep.subr.mxu0 0.0
    %687 = vmatpush1.msra.mxu0 %v511
    %688 = vmatprep.subr.mxu0 0.0
    %689 = vmatpush1.msra.mxu0 %v512
    %690 = vmatprep.subr.mxu0 0.0
    %691 = vmatpush1.msra.mxu0 %v513
    %692 = vmatprep.subr.mxu0 0.0
    %693 = vmatpush1.msra.mxu0 %v514
    %694 = vmatprep.subr.mxu0 0.0
    %695 = vmatpush1.msra.mxu0 0.0
    %696 = vmatprep.subr.mxu0 0.0
    %697 = vmatpush1.msra.mxu0 0.0
    %698 = vmatprep.subr.mxu0 0.0
    %699 = vmatpush1.msra.mxu0 0.0
    %700 = vmatprep.subr.mxu0 0.0
    %701 = vmatpush1.msra.mxu0 0.0
    %702 = vmatprep.subr.mxu0 0.0
    %703 = vmatpush1.msra.mxu0 0.0
    %704 = vmatprep.subr.mxu0 0.0
    %705 = vmatpush1.msra.mxu0 0.0
    %706 = vmatprep.subr.mxu0 0.0
    %707 = vmatpush1.msra.mxu0 0.0
    %708 = vmatprep.subr.mxu0 0.0
    %709 = vmatpush1.msra.mxu0 0.0
    %710 = vmatprep.subr.mxu0 0.0
    %711 = vmatpush1.msra.mxu0 0.0
    %712 = vmatprep.subr.mxu0 0.0
    %713 = vmatpush1.msra.mxu0 0.0
    %714 = vmatprep.subr.mxu0 0.0
    %715 = vmatpush1.msra.mxu0 0.0
    %716 = vmatprep.subr.mxu0 0.0
    %717 = vmatpush1.msra.mxu0 0.0
    %718 = vmatprep.subr.mxu0 0.0
    %719 = vmatpush1.msra.mxu0 0.0
    %720 = vmatprep.subr.mxu0 0.0
    %721 = vmatpush1.msra.mxu0 0.0
    %722 = vmatprep.subr.mxu0 0.0
    %723 = vmatpush1.msra.mxu0 0.0
    %724 = vmatprep.subr.mxu0 0.0
    %725 = vmatpush1.msra.mxu0 0.0
    %726 = vmatprep.subr.mxu0 0.0
    %727 = vmatpush1.msra.mxu0 0.0
    %728 = vmatprep.subr.mxu0 0.0
    %729 = vmatpush1.msra.mxu0 0.0
    %730 = vmatprep.subr.mxu0 0.0
    %731 = vmatpush1.msra.mxu0 0.0
    %732 = vmatprep.subr.mxu0 0.0
    %733 = vmatpush1.msra.mxu0 0.0
    %734 = vmatprep.subr.mxu0 0.0
    %735 = vmatpush1.msra.mxu0 0.0
    %736 = vmatprep.subr.mxu0 0.0
    %737 = vmatpush1.msra.mxu0 0.0
    %738 = vmatprep.subr.mxu0 0.0
    %739 = vmatpush1.msra.mxu0 0.0
    %740 = vmatprep.subr.mxu0 0.0
    %741 = vmatpush1.msra.mxu0 0.0
    %742 = vmatprep.subr.mxu0 0.0
    %743 = vmatpush1.msra.mxu0 0.0
    %744 = vmatprep.subr.mxu0 0.0
    %745 = vmatpush1.msra.mxu0 0.0
    %746 = vmatprep.subr.mxu0 0.0
    %747 = vmatpush1.msra.mxu0 0.0
    %748 = vmatprep.subr.mxu0 0.0
    %749 = vmatpush1.msra.mxu0 0.0
    %750 = vmatprep.mubr.f32.mxu0 0.0
    %751 = vmatmul.mubr.f32.gmra.mrb[0].mxu0 %v684
    %v752 = vpop.f32.mrb[0].mxu0
    %v753 = vadd.f32 0.0, %v752
    %v754 = vpop.f32.mrb[0].mxu0
    %755 = vdwg.mxu0
    %s756 = scalar_lea.vmem [#allocation14], 96
    %v757 = vld [vmem:[%s756] sm:$0xff]
    %v758 = vld [vmem:[%s756 + $0x8] sm:$0xff]
    %v759 = vld [vmem:[%s756 + $0x10] sm:$0xff]
    %v760 = vld [vmem:[%s756 + $0x18] sm:$0xff]
    %s761 = scalar_lea.vmem %s6, 48
    %v762 = vld [vmem:[%s761] sm:$0xff]
    %v764 = vsel %vm279, %v753, 0
    %766 = vmatprep.subr.mxu0 0.0
    %767 = vmatpush1.msra.mxu0 %v757
    %768 = vmatprep.subr.mxu0 0.0
    %769 = vmatpush1.msra.mxu0 %v758
    %770 = vmatprep.subr.mxu0 0.0
    %771 = vmatpush1.msra.mxu0 %v759
    %772 = vmatprep.subr.mxu0 0.0
    %773 = vmatpush1.msra.mxu0 %v760
    %774 = vmatprep.subr.mxu0 0.0
    %775 = vmatpush1.msra.mxu0 0.0
    %776 = vmatprep.subr.mxu0 0.0
    %777 = vmatpush1.msra.mxu0 0.0
    %778 = vmatprep.subr.mxu0 0.0
    %779 = vmatpush1.msra.mxu0 0.0
    %780 = vmatprep.subr.mxu0 0.0
    %781 = vmatpush1.msra.mxu0 0.0
    %782 = vmatprep.subr.mxu0 0.0
    %783 = vmatpush1.msra.mxu0 0.0
    %784 = vmatprep.subr.mxu0 0.0
    %785 = vmatpush1.msra.mxu0 0.0
    %786 = vmatprep.subr.mxu0 0.0
    %787 = vmatpush1.msra.mxu0 0.0
    %788 = vmatprep.subr.mxu0 0.0
    %789 = vmatpush1.msra.mxu0 0.0
    %790 = vmatprep.subr.mxu0 0.0
    %791 = vmatpush1.msra.mxu0 0.0
    %792 = vmatprep.subr.mxu0 0.0
    %793 = vmatpush1.msra.mxu0 0.0
    %794 = vmatprep.subr.mxu0 0.0
    %795 = vmatpush1.msra.mxu0 0.0
    %796 = vmatprep.subr.mxu0 0.0
    %797 = vmatpush1.msra.mxu0 0.0
    %798 = vmatprep.subr.mxu0 0.0
    %799 = vmatpush1.msra.mxu0 0.0
    %800 = vmatprep.subr.mxu0 0.0
    %801 = vmatpush1.msra.mxu0 0.0
    %802 = vmatprep.subr.mxu0 0.0
    %803 = vmatpush1.msra.mxu0 0.0
    %804 = vmatprep.subr.mxu0 0.0
    %805 = vmatpush1.msra.mxu0 0.0
    %806 = vmatprep.subr.mxu0 0.0
    %807 = vmatpush1.msra.mxu0 0.0
    %808 = vmatprep.subr.mxu0 0.0
    %809 = vmatpush1.msra.mxu0 0.0
    %810 = vmatprep.subr.mxu0 0.0
    %811 = vmatpush1.msra.mxu0 0.0
    %812 = vmatprep.subr.mxu0 0.0
    %813 = vmatpush1.msra.mxu0 0.0
    %814 = vmatprep.subr.mxu0 0.0
    %815 = vmatpush1.msra.mxu0 0.0
    %816 = vmatprep.subr.mxu0 0.0
    %817 = vmatpush1.msra.mxu0 0.0
    %818 = vmatprep.subr.mxu0 0.0
    %819 = vmatpush1.msra.mxu0 0.0
    %820 = vmatprep.subr.mxu0 0.0
    %821 = vmatpush1.msra.mxu0 0.0
    %822 = vmatprep.subr.mxu0 0.0
    %823 = vmatpush1.msra.mxu0 0.0
    %824 = vmatprep.subr.mxu0 0.0
    %825 = vmatpush1.msra.mxu0 0.0
    %826 = vmatprep.subr.mxu0 0.0
    %827 = vmatpush1.msra.mxu0 0.0
    %828 = vmatprep.subr.mxu0 0.0
    %829 = vmatpush1.msra.mxu0 0.0
    %830 = vmatprep.mubr.f32.mxu0 0.0
    %831 = vmatmul.mubr.f32.gmra.mrb[0].mxu0 %v764
    %v832 = vpop.f32.mrb[0].mxu0
    %v833 = vadd.f32 %v762, %v832
    %v834 = vpop.f32.mrb[0].mxu0
    %835 = vdwg.mxu0
    %836 = vset.pattern.permute.xlu0 3
    %837 = vperm.xlu0 %836, %v159
    %v838 = vpop.permute.xlu0 %837
    %v840 = vmul.f32 %v833, %v838
    %v841 = vadd.f32 %v261, %v840
    %s842 = scalar_lea.vmem %s6, 64
    %v843 = vld [vmem:[%s842] sm:$0xff]
    %s844 = scalar_lea.vmem %s6, 72
    %v845 = vld [vmem:[%s844] sm:$0xff]
    %v846 = vsel %vm279, %v841, 0.0
    %847 = vadd.xlane.f32.xlu0 %v846
    %v848 = vpop.xlane.xlu0 %847
    %v849 = vrcp.pop 32.0
    %v850 = vmul.f32 %v848, %v849
    %v851 = vsub.f32 %v841, %v850
    %v852 = vmul.f32 %v851, %v851
    %v853 = vsel %vm279, %v852, 0.0
    %854 = vadd.xlane.f32.xlu0 %v853
    %v855 = vpop.xlane.xlu0 %854
    %v856 = vmul.f32 %v855, %v849
    %v857 = vadd.f32 %v856, 1e-05
    %v858 = vrsqrt.pop %v857
    %v859 = vmul.f32 %v851, %v858
    %v860 = vmul.f32 %v859, %v843
    %v861 = vadd.f32 %v860, %v845
    %v862 = vld [vmem:[#allocation16] sm:$0xff]
    %v863 = vld [vmem:[#allocation16 + $0x8] sm:$0xff]
    %v864 = vld [vmem:[#allocation16 + $0x10] sm:$0xff]
    %v865 = vld [vmem:[#allocation16 + $0x18] sm:$0xff]
    %v866 = vld [vmem:[#allocation11] sm:$0xff]
    %v868 = vsel %vm279, %v861, 0
    %870 = vmatprep.subr.mxu0 0.0
    %871 = vmatpush1.msra.mxu0 %v862
    %872 = vmatprep.subr.mxu0 0.0
    %873 = vmatpush1.msra.mxu0 %v863
    %874 = vmatprep.subr.mxu0 0.0
    %875 = vmatpush1.msra.mxu0 %v864
    %876 = vmatprep.subr.mxu0 0.0
    %877 = vmatpush1.msra.mxu0 %v865
    %878 = vmatprep.subr.mxu0 0.0
    %879 = vmatpush1.msra.mxu0 0.0
    %880 = vmatprep.subr.mxu0 0.0
    %881 = vmatpush1.msra.mxu0 0.0
    %882 = vmatprep.subr.mxu0 0.0
    %883 = vmatpush1.msra.mxu0 0.0
    %884 = vmatprep.subr.mxu0 0.0
    %885 = vmatpush1.msra.mxu0 0.0
    %886 = vmatprep.subr.mxu0 0.0
    %887 = vmatpush1.msra.mxu0 0.0
    %888 = vmatprep.subr.mxu0 0.0
    %889 = vmatpush1.msra.mxu0 0.0
    %890 = vmatprep.subr.mxu0 0.0
    %891 = vmatpush1.msra.mxu0 0.0
    %892 = vmatprep.subr.mxu0 0.0
    %893 = vmatpush1.msra.mxu0 0.0
    %894 = vmatprep.subr.mxu0 0.0
    %895 = vmatpush1.msra.mxu0 0.0
    %896 = vmatprep.subr.mxu0 0.0
    %897 = vmatpush1.msra.mxu0 0.0
    %898 = vmatprep.subr.mxu0 0.0
    %899 = vmatpush1.msra.mxu0 0.0
    %900 = vmatprep.subr.mxu0 0.0
    %901 = vmatpush1.msra.mxu0 0.0
    %902 = vmatprep.subr.mxu0 0.0
    %903 = vmatpush1.msra.mxu0 0.0
    %904 = vmatprep.subr.mxu0 0.0
    %905 = vmatpush1.msra.mxu0 0.0
    %906 = vmatprep.subr.mxu0 0.0
    %907 = vmatpush1.msra.mxu0 0.0
    %908 = vmatprep.subr.mxu0 0.0
    %909 = vmatpush1.msra.mxu0 0.0
    %910 = vmatprep.subr.mxu0 0.0
    %911 = vmatpush1.msra.mxu0 0.0
    %912 = vmatprep.subr.mxu0 0.0
    %913 = vmatpush1.msra.mxu0 0.0
    %914 = vmatprep.subr.mxu0 0.0
    %915 = vmatpush1.msra.mxu0 0.0
    %916 = vmatprep.subr.mxu0 0.0
    %917 = vmatpush1.msra.mxu0 0.0
    %918 = vmatprep.subr.mxu0 0.0
    %919 = vmatpush1.msra.mxu0 0.0
    %920 = vmatprep.subr.mxu0 0.0
    %921 = vmatpush1.msra.mxu0 0.0
    %922 = vmatprep.subr.mxu0 0.0
    %923 = vmatpush1.msra.mxu0 0.0
    %924 = vmatprep.subr.mxu0 0.0
    %925 = vmatpush1.msra.mxu0 0.0
    %926 = vmatprep.subr.mxu0 0.0
    %927 = vmatpush1.msra.mxu0 0.0
    %928 = vmatprep.subr.mxu0 0.0
    %929 = vmatpush1.msra.mxu0 0.0
    %930 = vmatprep.subr.mxu0 0.0
    %931 = vmatpush1.msra.mxu0 0.0
    %932 = vmatprep.subr.mxu0 0.0
    %933 = vmatpush1.msra.mxu0 0.0
    %934 = vmatprep.mubr.f32.mxu0 0.0
    %935 = vmatmul.mubr.f32.gmra.mrb[0].mxu0 %v868
    %v936 = vpop.f32.mrb[0].mxu0
    %v937 = vadd.f32 %v866, %v936
    %v938 = vpop.f32.mrb[0].mxu0
    %939 = vdwg.mxu0
    %v940 = vmul.f32 %v937, %v937
    %v941 = vmul.f32 %v937, %v940
    %v942 = vmul.f32 %v941, 0.044715
    %v943 = vadd.f32 %v937, %v942
    %v944 = vmul.f32 %v943, 0.7978846
    %v945 = vtanh.pop %v944
    %v946 = vadd.f32 %v945, 1.0
    %v947 = vmul.f32 %v946, 0.5
    %v948 = vmul.f32 %v937, %v947
    %v949 = vld [vmem:[%s11] sm:$0xff]
    %v950 = vld [vmem:[%s11 + $0x8] sm:$0xff]
    %v951 = vld [vmem:[%s11 + $0x10] sm:$0xff]
    %v952 = vld [vmem:[%s11 + $0x18] sm:$0xff]
    %v953 = vld [vmem:[%s11 + $0x20] sm:$0xff]
    %v954 = vld [vmem:[%s11 + $0x28] sm:$0xff]
    %v955 = vld [vmem:[%s11 + $0x30] sm:$0xff]
    %v956 = vld [vmem:[%s11 + $0x38] sm:$0xff]
    %s957 = scalar_lea.vmem %s6, 56
    %v958 = vld [vmem:[%s957] sm:$0xff]
    %vm959 = vcmask 523264
    %v961 = vsel %vm959, %v948, 0
    %963 = vmatprep.subr.mxu0 0.0
    %964 = vmatpush1.msra.mxu0 %v949
    %965 = vmatprep.subr.mxu0 0.0
    %966 = vmatpush1.msra.mxu0 %v950
    %967 = vmatprep.subr.mxu0 0.0
    %968 = vmatpush1.msra.mxu0 %v951
    %969 = vmatprep.subr.mxu0 0.0
    %970 = vmatpush1.msra.mxu0 %v952
    %971 = vmatprep.subr.mxu0 0.0
    %972 = vmatpush1.msra.mxu0 %v953
    %973 = vmatprep.subr.mxu0 0.0
    %974 = vmatpush1.msra.mxu0 %v954
    %975 = vmatprep.subr.mxu0 0.0
    %976 = vmatpush1.msra.mxu0 %v955
    %977 = vmatprep.subr.mxu0 0.0
    %978 = vmatpush1.msra.mxu0 %v956
    %979 = vmatprep.subr.mxu0 0.0
    %980 = vmatpush1.msra.mxu0 0.0
    %981 = vmatprep.subr.mxu0 0.0
    %982 = vmatpush1.msra.mxu0 0.0
    %983 = vmatprep.subr.mxu0 0.0
    %984 = vmatpush1.msra.mxu0 0.0
    %985 = vmatprep.subr.mxu0 0.0
    %986 = vmatpush1.msra.mxu0 0.0
    %987 = vmatprep.subr.mxu0 0.0
    %988 = vmatpush1.msra.mxu0 0.0
    %989 = vmatprep.subr.mxu0 0.0
    %990 = vmatpush1.msra.mxu0 0.0
    %991 = vmatprep.subr.mxu0 0.0
    %992 = vmatpush1.msra.mxu0 0.0
    %993 = vmatprep.subr.mxu0 0.0
    %994 = vmatpush1.msra.mxu0 0.0
    %995 = vmatprep.subr.mxu0 0.0
    %996 = vmatpush1.msra.mxu0 0.0
    %997 = vmatprep.subr.mxu0 0.0
    %998 = vmatpush1.msra.mxu0 0.0
    %999 = vmatprep.subr.mxu0 0.0
    %1000 = vmatpush1.msra.mxu0 0.0
    %1001 = vmatprep.subr.mxu0 0.0
    %1002 = vmatpush1.msra.mxu0 0.0
    %1003 = vmatprep.subr.mxu0 0.0
    %1004 = vmatpush1.msra.mxu0 0.0
    %1005 = vmatprep.subr.mxu0 0.0
    %1006 = vmatpush1.msra.mxu0 0.0
    %1007 = vmatprep.subr.mxu0 0.0
    %1008 = vmatpush1.msra.mxu0 0.0
    %1009 = vmatprep.subr.mxu0 0.0
    %1010 = vmatpush1.msra.mxu0 0.0
    %1011 = vmatprep.subr.mxu0 0.0
    %1012 = vmatpush1.msra.mxu0 0.0
    %1013 = vmatprep.subr.mxu0 0.0
    %1014 = vmatpush1.msra.mxu0 0.0
    %1015 = vmatprep.subr.mxu0 0.0
    %1016 = vmatpush1.msra.mxu0 0.0
    %1017 = vmatprep.subr.mxu0 0.0
    %1018 = vmatpush1.msra.mxu0 0.0
    %1019 = vmatprep.subr.mxu0 0.0
    %1020 = vmatpush1.msra.mxu0 0.0
    %1021 = vmatprep.subr.mxu0 0.0
    %1022 = vmatpush1.msra.mxu0 0.0
    %1023 = vmatprep.subr.mxu0 0.0
    %1024 = vmatpush1.msra.mxu0 0.0
    %1025 = vmatprep.subr.mxu0 0.0
    %1026 = vmatpush1.msra.mxu0 0.0
    %1027 = vmatprep.mubr.f32.mxu0 0.0
    %1028 = vmatmul.mubr.f32.gmra.mrb[0].mxu0 %v961
    %v1029 = vpop.f32.mrb[0].mxu0
    %v1030 = vadd.f32 %v958, %v1029
    %v1031 = vpop.f32.mrb[0].mxu0
    %1032 = vdwg.mxu0
    %v1033 = vadd.f32 %v861, %v1030
    %s1034 = scalar_lea.vmem %s6, 80
    %v1035 = vld [vmem:[%s1034] sm:$0xff]
    %s1036 = scalar_lea.vmem %s6, 88
    %v1037 = vld [vmem:[%s1036] sm:$0xff]
    %v1038 = vsel %vm279, %v1033, 0.0
    %1039 = vadd.xlane.f32.xlu0 %v1038
    %v1040 = vpop.xlane.xlu0 %1039
    %v1041 = vmul.f32 %v1040, %v849
    %v1042 = vsub.f32 %v1033, %v1041
    %v1043 = vmul.f32 %v1042, %v1042
    %v1044 = vsel %vm279, %v1043, 0.0
    %1045 = vadd.xlane.f32.xlu0 %v1044
    %v1046 = vpop.xlane.xlu0 %1045
    %v1047 = vmul.f32 %v1046, %v849
    %v1048 = vadd.f32 %v1047, 1e-05
    %v1049 = vrsqrt.pop %v1048
    %v1050 = vmul.f32 %v1042, %v1049
    %v1051 = vmul.f32 %v1050, %v1035
    %v1052 = vadd.f32 %v1051, %v1037
    %s1053 = scalar_lea.vmem [#allocation14], 128
    %v1054 = vld [vmem:[%s1053] sm:$0xff]
    %v1055 = vld [vmem:[%s1053 + $0x8] sm:$0xff]
    %v1056 = vld [vmem:[%s1053 + $0x10] sm:$0xff]
    %v1057 = vld [vmem:[%s1053 + $0x18] sm:$0xff]
    %s1058 = scalar_lea.vmem %s6, 96
    %v1059 = vld [vmem:[%s1058] sm:$0xff]
    %v1061 = vsel %vm279, %v1052, 0
    %1063 = vmatprep.subr.mxu0 0.0
    %1064 = vmatpush1.msra.mxu0 %v1054
    %1065 = vmatprep.subr.mxu0 0.0
    %1066 = vmatpush1.msra.mxu0 %v1055
    %1067 = vmatprep.subr.mxu0 0.0
    %1068 = vmatpush1.msra.mxu0 %v1056
    %1069 = vmatprep.subr.mxu0 0.0
    %1070 = vmatpush1.msra.mxu0 %v1057
    %1071 = vmatprep.subr.mxu0 0.0
    %1072 = vmatpush1.msra.mxu0 0.0
    %1073 = vmatprep.subr.mxu0 0.0
    %1074 = vmatpush1.msra.mxu0 0.0
    %1075 = vmatprep.subr.mxu0 0.0
    %1076 = vmatpush1.msra.mxu0 0.0
    %1077 = vmatprep.subr.mxu0 0.0
    %1078 = vmatpush1.msra.mxu0 0.0
    %1079 = vmatprep.subr.mxu0 0.0
    %1080 = vmatpush1.msra.mxu0 0.0
    %1081 = vmatprep.subr.mxu0 0.0
    %1082 = vmatpush1.msra.mxu0 0.0
    %1083 = vmatprep.subr.mxu0 0.0
    %1084 = vmatpush1.msra.mxu0 0.0
    %1085 = vmatprep.subr.mxu0 0.0
    %1086 = vmatpush1.msra.mxu0 0.0
    %1087 = vmatprep.subr.mxu0 0.0
    %1088 = vmatpush1.msra.mxu0 0.0
    %1089 = vmatprep.subr.mxu0 0.0
    %1090 = vmatpush1.msra.mxu0 0.0
    %1091 = vmatprep.subr.mxu0 0.0
    %1092 = vmatpush1.msra.mxu0 0.0
    %1093 = vmatprep.subr.mxu0 0.0
    %1094 = vmatpush1.msra.mxu0 0.0
    %1095 = vmatprep.subr.mxu0 0.0
    %1096 = vmatpush1.msra.mxu0 0.0
    %1097 = vmatprep.subr.mxu0 0.0
    %1098 = vmatpush1.msra.mxu0 0.0
    %1099 = vmatprep.subr.mxu0 0.0
    %1100 = vmatpush1.msra.mxu0 0.0
    %1101 = vmatprep.subr.mxu0 0.0
    %1102 = vmatpush1.msra.mxu0 0.0
    %1103 = vmatprep.subr.mxu0 0.0
    %1104 = vmatpush1.msra.mxu0 0.0
    %1105 = vmatprep.subr.mxu0 0.0
    %1106 = vmatpush1.msra.mxu0 0.0
    %1107 = vmatprep.subr.mxu0 0.0
    %1108 = vmatpush1.msra.mxu0 0.0
    %1109 = vmatprep.subr.mxu0 0.0
    %1110 = vmatpush1.msra.mxu0 0.0
    %1111 = vmatprep.subr.mxu0 0.0
    %1112 = vmatpush1.msra.mxu0 0.0
    %1113 = vmatprep.subr.mxu0 0.0
    %1114 = vmatpush1.msra.mxu0 0.0
    %1115 = vmatprep.subr.mxu0 0.0
    %1116 = vmatpush1.msra.mxu0 0.0
    %1117 = vmatprep.subr.mxu0 0.0
    %1118 = vmatpush1.msra.mxu0 0.0
    %1119 = vmatprep.subr.mxu0 0.0
    %1120 = vmatpush1.msra.mxu0 0.0
    %1121 = vmatprep.subr.mxu0 0.0
    %1122 = vmatpush1.msra.mxu0 0.0
    %1123 = vmatprep.subr.mxu0 0.0
    %1124 = vmatpush1.msra.mxu0 0.0
    %1125 = vmatprep.subr.mxu0 0.0
    %1126 = vmatpush1.msra.mxu0 0.0
    %1127 = vmatprep.mubr.f32.mxu0 0.0
    %1128 = vmatmul.mubr.f32.gmra.mrb[0].mxu0 %v1061
    %v1129 = vpop.f32.mrb[0].mxu0
    %v1130 = vadd.f32 %v1059, %v1129
    %v1131 = vpop.f32.mrb[0].mxu0
    %1132 = vdwg.mxu0
    %s1133 = scalar_lea.vmem [#allocation14], 160
    %v1134 = vld [vmem:[%s1133] sm:$0xff]
    %v1135 = vld [vmem:[%s1133 + $0x8] sm:$0xff]
    %v1136 = vld [vmem:[%s1133 + $0x10] sm:$0xff]
    %v1137 = vld [vmem:[%s1133 + $0x18] sm:$0xff]
    %s1138 = scalar_lea.vmem %s6, 104
    %v1139 = vld [vmem:[%s1138] sm:$0xff]
    %1140 = vmatprep.subr.mxu0 0.0
    %1141 = vmatpush1.msra.mxu0 %v1134
    %1142 = vmatprep.subr.mxu0 0.0
    %1143 = vmatpush1.msra.mxu0 %v1135
    %1144 = vmatprep.subr.mxu0 0.0
    %1145 = vmatpush1.msra.mxu0 %v1136
    %1146 = vmatprep.subr.mxu0 0.0
    %1147 = vmatpush1.msra.mxu0 %v1137
    %1148 = vmatprep.subr.mxu0 0.0
    %1149 = vmatpush1.msra.mxu0 0.0
    %1150 = vmatprep.subr.mxu0 0.0
    %1151 = vmatpush1.msra.mxu0 0.0
    %1152 = vmatprep.subr.mxu0 0.0
    %1153 = vmatpush1.msra.mxu0 0.0
    %1154 = vmatprep.subr.mxu0 0.0
    %1155 = vmatpush1.msra.mxu0 0.0
    %1156 = vmatprep.subr.mxu0 0.0
    %1157 = vmatpush1.msra.mxu0 0.0
    %1158 = vmatprep.subr.mxu0 0.0
    %1159 = vmatpush1.msra.mxu0 0.0
    %1160 = vmatprep.subr.mxu0 0.0
    %1161 = vmatpush1.msra.mxu0 0.0
    %1162 = vmatprep.subr.mxu0 0.0
    %1163 = vmatpush1.msra.mxu0 0.0
    %1164 = vmatprep.subr.mxu0 0.0
    %1165 = vmatpush1.msra.mxu0 0.0
    %1166 = vmatprep.subr.mxu0 0.0
    %1167 = vmatpush1.msra.mxu0 0.0
    %1168 = vmatprep.subr.mxu0 0.0
    %1169 = vmatpush1.msra.mxu0 0.0
    %1170 = vmatprep.subr.mxu0 0.0
    %1171 = vmatpush1.msra.mxu0 0.0
    %1172 = vmatprep.subr.mxu0 0.0
    %1173 = vmatpush1.msra.mxu0 0.0
    %1174 = vmatprep.subr.mxu0 0.0
    %1175 = vmatpush1.msra.mxu0 0.0
    %1176 = vmatprep.subr.mxu0 0.0
    %1177 = vmatpush1.msra.mxu0 0.0
    %1178 = vmatprep.subr.mxu0 0.0
    %1179 = vmatpush1.msra.mxu0 0.0
    %1180 = vmatprep.subr.mxu0 0.0
    %1181 = vmatpush1.msra.mxu0 0.0
    %1182 = vmatprep.subr.mxu0 0.0
    %1183 = vmatpush1.msra.mxu0 0.0
    %1184 = vmatprep.subr.mxu0 0.0
    %1185 = vmatpush1.msra.mxu0 0.0
    %1186 = vmatprep.subr.mxu0 0.0
    %1187 = vmatpush1.msra.mxu0 0.0
    %1188 = vmatprep.subr.mxu0 0.0
    %1189 = vmatpush1.msra.mxu0 0.0
    %1190 = vmatprep.subr.mxu0 0.0
    %1191 = vmatpush1.msra.mxu0 0.0
    %1192 = vmatprep.subr.mxu0 0.0
    %1193 = vmatpush1.msra.mxu0 0.0
    %1194 = vmatprep.subr.mxu0 0.0
    %1195 = vmatpush1.msra.mxu0 0.0
    %1196 = vmatprep.subr.mxu0 0.0
    %1197 = vmatpush1.msra.mxu0 0.0
    %1198 = vmatprep.subr.mxu0 0.0
    %1199 = vmatpush1.msra.mxu0 0.0
    %1200 = vmatprep.subr.mxu0 0.0
    %1201 = vmatpush1.msra.mxu0 0.0
    %1202 = vmatprep.subr.mxu0 0.0
    %1203 = vmatpush1.msra.mxu0 0.0
    %1204 = vmatprep.mubr.f32.mxu0 0.0
    %1205 = vmatmul.mubr.f32.gmra.mrb[0].mxu0 %v1061
    %v1206 = vpop.f32.mrb[0].mxu0
    %v1207 = vadd.f32 %v1139, %v1206
    %v1208 = vpop.f32.mrb[0].mxu0
    %1209 = vdwg.mxu0
    %s1210 = scalar_lea.vmem [#allocation14], 192
    %v1211 = vld [vmem:[%s1210] sm:$0xff]
    %v1212 = vld [vmem:[%s1210 + $0x8] sm:$0xff]
    %v1213 = vld [vmem:[%s1210 + $0x10] sm:$0xff]
    %v1214 = vld [vmem:[%s1210 + $0x18] sm:$0xff]
    %s1215 = scalar_lea.vmem %s6, 112
    %v1216 = vld [vmem:[%s1215] sm:$0xff]
    %1217 = vmatprep.subr.mxu0 0.0
    %1218 = vmatpush1.msra.mxu0 %v1211
    %1219 = vmatprep.subr.mxu0 0.0
    %1220 = vmatpush1.msra.mxu0 %v1212
    %1221 = vmatprep.subr.mxu0 0.0
    %1222 = vmatpush1.msra.mxu0 %v1213
    %1223 = vmatprep.subr.mxu0 0.0
    %1224 = vmatpush1.msra.mxu0 %v1214
    %1225 = vmatprep.subr.mxu0 0.0
    %1226 = vmatpush1.msra.mxu0 0.0
    %1227 = vmatprep.subr.mxu0 0.0
    %1228 = vmatpush1.msra.mxu0 0.0
    %1229 = vmatprep.subr.mxu0 0.0
    %1230 = vmatpush1.msra.mxu0 0.0
    %1231 = vmatprep.subr.mxu0 0.0
    %1232 = vmatpush1.msra.mxu0 0.0
    %1233 = vmatprep.subr.mxu0 0.0
    %1234 = vmatpush1.msra.mxu0 0.0
    %1235 = vmatprep.subr.mxu0 0.0
    %1236 = vmatpush1.msra.mxu0 0.0
    %1237 = vmatprep.subr.mxu0 0.0
    %1238 = vmatpush1.msra.mxu0 0.0
    %1239 = vmatprep.subr.mxu0 0.0
    %1240 = vmatpush1.msra.mxu0 0.0
    %1241 = vmatprep.subr.mxu0 0.0
    %1242 = vmatpush1.msra.mxu0 0.0
    %1243 = vmatprep.subr.mxu0 0.0
    %1244 = vmatpush1.msra.mxu0 0.0
    %1245 = vmatprep.subr.mxu0 0.0
    %1246 = vmatpush1.msra.mxu0 0.0
    %1247 = vmatprep.subr.mxu0 0.0
    %1248 = vmatpush1.msra.mxu0 0.0
    %1249 = vmatprep.subr.mxu0 0.0
    %1250 = vmatpush1.msra.mxu0 0.0
    %1251 = vmatprep.subr.mxu0 0.0
    %1252 = vmatpush1.msra.mxu0 0.0
    %1253 = vmatprep.subr.mxu0 0.0
    %1254 = vmatpush1.msra.mxu0 0.0
    %1255 = vmatprep.subr.mxu0 0.0
    %1256 = vmatpush1.msra.mxu0 0.0
    %1257 = vmatprep.subr.mxu0 0.0
    %1258 = vmatpush1.msra.mxu0 0.0
    %1259 = vmatprep.subr.mxu0 0.0
    %1260 = vmatpush1.msra.mxu0 0.0
    %1261 = vmatprep.subr.mxu0 0.0
    %1262 = vmatpush1.msra.mxu0 0.0
    %1263 = vmatprep.subr.mxu0 0.0
    %1264 = vmatpush1.msra.mxu0 0.0
    %1265 = vmatprep.subr.mxu0 0.0
    %1266 = vmatpush1.msra.mxu0 0.0
    %1267 = vmatprep.subr.mxu0 0.0
    %1268 = vmatpush1.msra.mxu0 0.0
    %1269 = vmatprep.subr.mxu0 0.0
    %1270 = vmatpush1.msra.mxu0 0.0
    %1271 = vmatprep.subr.mxu0 0.0
    %1272 = vmatpush1.msra.mxu0 0.0
    %1273 = vmatprep.subr.mxu0 0.0
    %1274 = vmatpush1.msra.mxu0 0.0
    %1275 = vmatprep.subr.mxu0 0.0
    %1276 = vmatpush1.msra.mxu0 0.0
    %1277 = vmatprep.subr.mxu0 0.0
    %1278 = vmatpush1.msra.mxu0 0.0
    %1279 = vmatprep.subr.mxu0 0.0
    %1280 = vmatpush1.msra.mxu0 0.0
    %1281 = vmatprep.mubr.f32.mxu0 0.0
    %1282 = vmatmul.mubr.f32.gmra.mrb[0].mxu0 %v1061
    %v1283 = vpop.f32.mrb[0].mxu0
    %v1284 = vadd.f32 %v1216, %v1283
    %v1285 = vpop.f32.mrb[0].mxu0
    %1286 = vdwg.mxu0
    %v1287 = vmul.f32 %v1207, %v264
    %v1288 = vmul.f32 %v1207, %v265
    %v1289 = vmul.f32 %v1207, %v266
    %v1290 = vmul.f32 %v1207, %v267
    %v1291 = vmul.f32 %v1284, %v264
    %v1292 = vmul.f32 %v1284, %v265
    %v1293 = vmul.f32 %v1284, %v266
    %v1294 = vmul.f32 %v1284, %v267
    %v1296 = vsel %vm279, %v1130, 0
    %v1299 = vsel %vm279, %v1287, 0
    %v1302 = vsel %vm279, %v1288, 0
    %v1305 = vsel %vm279, %v1289, 0
    %v1308 = vsel %vm279, %v1290, 0
    %1310 = vmatprep.subr.mxu0 0.0
    %1311 = vmatpush1.xpose.msra.mxu0 %v1299
    %1312 = vmatprep.subr.mxu0 0.0
    %1313 = vmatpush1.xpose.msra.mxu0 %v1302
    %1314 = vmatprep.subr.mxu0 0.0
    %1315 = vmatpush1.xpose.msra.mxu0 %v1305
    %1316 = vmatprep.subr.mxu0 0.0
    %1317 = vmatpush1.xpose.msra.mxu0 %v1308
    %1318 = vmatprep.subr.mxu0 0.0
    %1319 = vmatpush1.xpose.msra.mxu0 0.0
    %1320 = vmatprep.subr.mxu0 0.0
    %1321 = vmatpush1.xpose.msra.mxu0 0.0
    %1322 = vmatprep.subr.mxu0 0.0
    %1323 = vmatpush1.xpose.msra.mxu0 0.0
    %1324 = vmatprep.subr.mxu0 0.0
    %1325 = vmatpush1.xpose.msra.mxu0 0.0
    %1326 = vmatprep.subr.mxu0 0.0
    %1327 = vmatpush1.xpose.msra.mxu0 0.0
    %1328 = vmatprep.subr.mxu0 0.0
    %1329 = vmatpush1.xpose.msra.mxu0 0.0
    %1330 = vmatprep.subr.mxu0 0.0
    %1331 = vmatpush1.xpose.msra.mxu0 0.0
    %1332 = vmatprep.subr.mxu0 0.0
    %1333 = vmatpush1.xpose.msra.mxu0 0.0
    %1334 = vmatprep.subr.mxu0 0.0
    %1335 = vmatpush1.xpose.msra.mxu0 0.0
    %1336 = vmatprep.subr.mxu0 0.0
    %1337 = vmatpush1.xpose.msra.mxu0 0.0
    %1338 = vmatprep.subr.mxu0 0.0
    %1339 = vmatpush1.xpose.msra.mxu0 0.0
    %1340 = vmatprep.subr.mxu0 0.0
    %1341 = vmatpush1.xpose.msra.mxu0 0.0
    %1342 = vmatprep.subr.mxu0 0.0
    %1343 = vmatpush1.xpose.msra.mxu0 0.0
    %1344 = vmatprep.subr.mxu0 0.0
    %1345 = vmatpush1.xpose.msra.mxu0 0.0
    %1346 = vmatprep.subr.mxu0 0.0
    %1347 = vmatpush1.xpose.msra.mxu0 0.0
    %1348 = vmatprep.subr.mxu0 0.0
    %1349 = vmatpush1.xpose.msra.mxu0 0.0
    %1350 = vmatprep.subr.mxu0 0.0
    %1351 = vmatpush1.xpose.msra.mxu0 0.0
    %1352 = vmatprep.subr.mxu0 0.0
    %1353 = vmatpush1.xpose.msra.mxu0 0.0
    %1354 = vmatprep.subr.mxu0 0.0
    %1355 = vmatpush1.xpose.msra.mxu0 0.0
    %1356 = vmatprep.subr.mxu0 0.0
    %1357 = vmatpush1.xpose.msra.mxu0 0.0
    %1358 = vmatprep.subr.mxu0 0.0
    %1359 = vmatpush1.xpose.msra.mxu0 0.0
    %1360 = vmatprep.subr.mxu0 0.0
    %1361 = vmatpush1.xpose.msra.mxu0 0.0
    %1362 = vmatprep.subr.mxu0 0.0
    %1363 = vmatpush1.xpose.msra.mxu0 0.0
    %1364 = vmatprep.subr.mxu0 0.0
    %1365 = vmatpush1.xpose.msra.mxu0 0.0
    %1366 = vmatprep.subr.mxu0 0.0
    %1367 = vmatpush1.xpose.msra.mxu0 0.0
    %1368 = vmatprep.subr.mxu0 0.0
    %1369 = vmatpush1.xpose.msra.mxu0 0.0
    %1370 = vmatprep.subr.mxu0 0.0
    %1371 = vmatpush1.xpose.msra.mxu0 0.0
    %1372 = vmatprep.subr.mxu0 0.0
    %1373 = vmatpush1.xpose.msra.mxu0 0.0
    %1374 = vmatprep.mubr.f32.mxu0 0.0
    %1375 = vmatmul.mubr.f32.gmra.mrb[0].mxu0 %v1296
    %v1376 = vpop.f32.mrb[0].mxu0
    %v1377 = vadd.f32 0.0, %v1376
    %v1378 = vpop.f32.mrb[0].mxu0
    %1379 = vdwg.mxu0
    %v1380 = vmul.f32 %v1377, 0.35355338
    %v1381 = vadd.f32 %v1380, %v268
    %v1382 = vsel %vm279, %v1381, -inf
    %1383 = vmax.xlane.f32.xlu0 %v1382
    %v1384 = vpop.xlane.xlu0 %1383
    %v1385 = vsub.f32 %v1381, %v1384
    %v1386 = vmul.f32 %v1385, 1.442695
    %v1387 = vpow.pop %v1386
    %v1389 = vsel %vm279, %v1387, 0
    %1391 = vmatprep.subr.mxu0 0.0
    %1392 = vmatpush1.msra.mxu0 %v269
    %1393 = vmatprep.subr.mxu0 0.0
    %1394 = vmatpush1.msra.mxu0 %v270
    %1395 = vmatprep.subr.mxu0 0.0
    %1396 = vmatpush1.msra.mxu0 %v271
    %1397 = vmatprep.subr.mxu0 0.0
    %1398 = vmatpush1.msra.mxu0 %v272
    %1399 = vmatprep.subr.mxu0 0.0
    %1400 = vmatpush1.msra.mxu0 0.0
    %1401 = vmatprep.subr.mxu0 0.0
    %1402 = vmatpush1.msra.mxu0 0.0
    %1403 = vmatprep.subr.mxu0 0.0
    %1404 = vmatpush1.msra.mxu0 0.0
    %1405 = vmatprep.subr.mxu0 0.0
    %1406 = vmatpush1.msra.mxu0 0.0
    %1407 = vmatprep.subr.mxu0 0.0
    %1408 = vmatpush1.msra.mxu0 0.0
    %1409 = vmatprep.subr.mxu0 0.0
    %1410 = vmatpush1.msra.mxu0 0.0
    %1411 = vmatprep.subr.mxu0 0.0
    %1412 = vmatpush1.msra.mxu0 0.0
    %1413 = vmatprep.subr.mxu0 0.0
    %1414 = vmatpush1.msra.mxu0 0.0
    %1415 = vmatprep.subr.mxu0 0.0
    %1416 = vmatpush1.msra.mxu0 0.0
    %1417 = vmatprep.subr.mxu0 0.0
    %1418 = vmatpush1.msra.mxu0 0.0
    %1419 = vmatprep.subr.mxu0 0.0
    %1420 = vmatpush1.msra.mxu0 0.0
    %1421 = vmatprep.subr.mxu0 0.0
    %1422 = vmatpush1.msra.mxu0 0.0
    %1423 = vmatprep.subr.mxu0 0.0
    %1424 = vmatpush1.msra.mxu0 0.0
    %1425 = vmatprep.subr.mxu0 0.0
    %1426 = vmatpush1.msra.mxu0 0.0
    %1427 = vmatprep.subr.mxu0 0.0
    %1428 = vmatpush1.msra.mxu0 0.0
    %1429 = vmatprep.subr.mxu0 0.0
    %1430 = vmatpush1.msra.mxu0 0.0
    %1431 = vmatprep.subr.mxu0 0.0
    %1432 = vmatpush1.msra.mxu0 0.0
    %1433 = vmatprep.subr.mxu0 0.0
    %1434 = vmatpush1.msra.mxu0 0.0
    %1435 = vmatprep.subr.mxu0 0.0
    %1436 = vmatpush1.msra.mxu0 0.0
    %1437 = vmatprep.subr.mxu0 0.0
    %1438 = vmatpush1.msra.mxu0 0.0
    %1439 = vmatprep.subr.mxu0 0.0
    %1440 = vmatpush1.msra.mxu0 0.0
    %1441 = vmatprep.subr.mxu0 0.0
    %1442 = vmatpush1.msra.mxu0 0.0
    %1443 = vmatprep.subr.mxu0 0.0
    %1444 = vmatpush1.msra.mxu0 0.0
    %1445 = vmatprep.subr.mxu0 0.0
    %1446 = vmatpush1.msra.mxu0 0.0
    %1447 = vmatprep.subr.mxu0 0.0
    %1448 = vmatpush1.msra.mxu0 0.0
    %1449 = vmatprep.subr.mxu0 0.0
    %1450 = vmatpush1.msra.mxu0 0.0
    %1451 = vmatprep.subr.mxu0 0.0
    %1452 = vmatpush1.msra.mxu0 0.0
    %1453 = vmatprep.subr.mxu0 0.0
    %1454 = vmatpush1.msra.mxu0 0.0
    %1455 = vmatprep.mubr.f32.mxu0 0.0
    %1456 = vmatmul.mubr.f32.gmra.mrb[0].mxu0 %v1389
    %v1457 = vpop.f32.mrb[0].mxu0
    %v1458 = vadd.f32 0.0, %v1457
    %v1459 = vpop.f32.mrb[0].mxu0
    %1460 = vdwg.mxu0
    %v1461 = vrcp.pop %v1458
    %v1462 = vmul.f32 %v1387, %v1461
    %v1464 = vsel %vm279, %v1462, 0
    %1466 = vmatprep.subr.mxu0 0.0
    %1467 = vmatpush1.msra.mxu0 %v1291
    %1468 = vmatprep.subr.mxu0 0.0
    %1469 = vmatpush1.msra.mxu0 %v1292
    %1470 = vmatprep.subr.mxu0 0.0
    %1471 = vmatpush1.msra.mxu0 %v1293
    %1472 = vmatprep.subr.mxu0 0.0
    %1473 = vmatpush1.msra.mxu0 %v1294
    %1474 = vmatprep.subr.mxu0 0.0
    %1475 = vmatpush1.msra.mxu0 0.0
    %1476 = vmatprep.subr.mxu0 0.0
    %1477 = vmatpush1.msra.mxu0 0.0
    %1478 = vmatprep.subr.mxu0 0.0
    %1479 = vmatpush1.msra.mxu0 0.0
    %1480 = vmatprep.subr.mxu0 0.0
    %1481 = vmatpush1.msra.mxu0 0.0
    %1482 = vmatprep.subr.mxu0 0.0
    %1483 = vmatpush1.msra.mxu0 0.0
    %1484 = vmatprep.subr.mxu0 0.0
    %1485 = vmatpush1.msra.mxu0 0.0
    %1486 = vmatprep.subr.mxu0 0.0
    %1487 = vmatpush1.msra.mxu0 0.0
    %1488 = vmatprep.subr.mxu0 0.0
    %1489 = vmatpush1.msra.mxu0 0.0
    %1490 = vmatprep.subr.mxu0 0.0
    %1491 = vmatpush1.msra.mxu0 0.0
    %1492 = vmatprep.subr.mxu0 0.0
    %1493 = vmatpush1.msra.mxu0 0.0
    %1494 = vmatprep.subr.mxu0 0.0
    %1495 = vmatpush1.msra.mxu0 0.0
    %1496 = vmatprep.subr.mxu0 0.0
    %1497 = vmatpush1.msra.mxu0 0.0
    %1498 = vmatprep.subr.mxu0 0.0
    %1499 = vmatpush1.msra.mxu0 0.0
    %1500 = vmatprep.subr.mxu0 0.0
    %1501 = vmatpush1.msra.mxu0 0.0
    %1502 = vmatprep.subr.mxu0 0.0
    %1503 = vmatpush1.msra.mxu0 0.0
    %1504 = vmatprep.subr.mxu0 0.0
    %1505 = vmatpush1.msra.mxu0 0.0
    %1506 = vmatprep.subr.mxu0 0.0
    %1507 = vmatpush1.msra.mxu0 0.0
    %1508 = vmatprep.subr.mxu0 0.0
    %1509 = vmatpush1.msra.mxu0 0.0
    %1510 = vmatprep.subr.mxu0 0.0
    %1511 = vmatpush1.msra.mxu0 0.0
    %1512 = vmatprep.subr.mxu0 0.0
    %1513 = vmatpush1.msra.mxu0 0.0
    %1514 = vmatprep.subr.mxu0 0.0
    %1515 = vmatpush1.msra.mxu0 0.0
    %1516 = vmatprep.subr.mxu0 0.0
    %1517 = vmatpush1.msra.mxu0 0.0
    %1518 = vmatprep.subr.mxu0 0.0
    %1519 = vmatpush1.msra.mxu0 0.0
    %1520 = vmatprep.subr.mxu0 0.0
    %1521 = vmatpush1.msra.mxu0 0.0
    %1522 = vmatprep.subr.mxu0 0.0
    %1523 = vmatpush1.msra.mxu0 0.0
    %1524 = vmatprep.subr.mxu0 0.0
    %1525 = vmatpush1.msra.mxu0 0.0
    %1526 = vmatprep.subr.mxu0 0.0
    %1527 = vmatpush1.msra.mxu0 0.0
    %1528 = vmatprep.subr.mxu0 0.0
    %1529 = vmatpush1.msra.mxu0 0.0
    %1530 = vmatprep.mubr.f32.mxu0 0.0
    %1531 = vmatmul.mubr.f32.gmra.mrb[0].mxu0 %v1464
    %v1532 = vpop.f32.mrb[0].mxu0
    %v1533 = vadd.f32 0.0, %v1532
    %v1534 = vpop.f32.mrb[0].mxu0
    %1535 = vdwg.mxu0
    %s1536 = scalar_lea.vmem [#allocation14], 224
    %v1537 = vld [vmem:[%s1536] sm:$0xff]
    %v1538 = vld [vmem:[%s1536 + $0x8] sm:$0xff]
    %v1539 = vld [vmem:[%s1536 + $0x10] sm:$0xff]
    %v1540 = vld [vmem:[%s1536 + $0x18] sm:$0xff]
    %s1541 = scalar_lea.vmem %s6, 120
    %v1542 = vld [vmem:[%s1541] sm:$0xff]
    %v1544 = vsel %vm279, %v1533, 0
    %1546 = vmatprep.subr.mxu0 0.0
    %1547 = vmatpush1.msra.mxu0 %v1537
    %1548 = vmatprep.subr.mxu0 0.0
    %1549 = vmatpush1.msra.mxu0 %v1538
    %1550 = vmatprep.subr.mxu0 0.0
    %1551 = vmatpush1.msra.mxu0 %v1539
    %1552 = vmatprep.subr.mxu0 0.0
    %1553 = vmatpush1.msra.mxu0 %v1540
    %1554 = vmatprep.subr.mxu0 0.0
    %1555 = vmatpush1.msra.mxu0 0.0
    %1556 = vmatprep.subr.mxu0 0.0
    %1557 = vmatpush1.msra.mxu0 0.0
    %1558 = vmatprep.subr.mxu0 0.0
    %1559 = vmatpush1.msra.mxu0 0.0
    %1560 = vmatprep.subr.mxu0 0.0
    %1561 = vmatpush1.msra.mxu0 0.0
    %1562 = vmatprep.subr.mxu0 0.0
    %1563 = vmatpush1.msra.mxu0 0.0
    %1564 = vmatprep.subr.mxu0 0.0
    %1565 = vmatpush1.msra.mxu0 0.0
    %1566 = vmatprep.subr.mxu0 0.0
    %1567 = vmatpush1.msra.mxu0 0.0
    %1568 = vmatprep.subr.mxu0 0.0
    %1569 = vmatpush1.msra.mxu0 0.0
    %1570 = vmatprep.subr.mxu0 0.0
    %1571 = vmatpush1.msra.mxu0 0.0
    %1572 = vmatprep.subr.mxu0 0.0
    %1573 = vmatpush1.msra.mxu0 0.0
    %1574 = vmatprep.subr.mxu0 0.0
    %1575 = vmatpush1.msra.mxu0 0.0
    %1576 = vmatprep.subr.mxu0 0.0
    %1577 = vmatpush1.msra.mxu0 0.0
    %1578 = vmatprep.subr.mxu0 0.0
    %1579 = vmatpush1.msra.mxu0 0.0
    %1580 = vmatprep.subr.mxu0 0.0
    %1581 = vmatpush1.msra.mxu0 0.0
    %1582 = vmatprep.subr.mxu0 0.0
    %1583 = vmatpush1.msra.mxu0 0.0
    %1584 = vmatprep.subr.mxu0 0.0
    %1585 = vmatpush1.msra.mxu0 0.0
    %1586 = vmatprep.subr.mxu0 0.0
    %1587 = vmatpush1.msra.mxu0 0.0
    %1588 = vmatprep.subr.mxu0 0.0
    %1589 = vmatpush1.msra.mxu0 0.0
    %1590 = vmatprep.subr.mxu0 0.0
    %1591 = vmatpush1.msra.mxu0 0.0
    %1592 = vmatprep.subr.mxu0 0.0
    %1593 = vmatpush1.msra.mxu0 0.0
    %1594 = vmatprep.subr.mxu0 0.0
    %1595 = vmatpush1.msra.mxu0 0.0
    %1596 = vmatprep.subr.mxu0 0.0
    %1597 = vmatpush1.msra.mxu0 0.0
    %1598 = vmatprep.subr.mxu0 0.0
    %1599 = vmatpush1.msra.mxu0 0.0
    %1600 = vmatprep.subr.mxu0 0.0
    %1601 = vmatpush1.msra.mxu0 0.0
    %1602 = vmatprep.subr.mxu0 0.0
    %1603 = vmatpush1.msra.mxu0 0.0
    %1604 = vmatprep.subr.mxu0 0.0
    %1605 = vmatpush1.msra.mxu0 0.0
    %1606 = vmatprep.subr.mxu0 0.0
    %1607 = vmatpush1.msra.mxu0 0.0
    %1608 = vmatprep.subr.mxu0 0.0
    %1609 = vmatpush1.msra.mxu0 0.0
    %1610 = vmatprep.mubr.f32.mxu0 0.0
    %1611 = vmatmul.mubr.f32.gmra.mrb[0].mxu0 %v1544
    %v1612 = vpop.f32.mrb[0].mxu0
    %v1613 = vadd.f32 %v1542, %v1612
    %v1614 = vpop.f32.mrb[0].mxu0
    %1615 = vdwg.mxu0
    %1616 = vset.pattern.permute.xlu0 4
    %1617 = vperm.xlu0 %1616, %v159
    %v1618 = vpop.permute.xlu0 %1617
    %v1620 = vmul.f32 %v1613, %v1618
    %v1621 = vadd.f32 %v1052, %v1620
    %s1622 = scalar_lea.vmem %s6, 136
    %v1623 = vld [vmem:[%s1622] sm:$0xff]
    %s1624 = scalar_lea.vmem %s6, 144
    %v1625 = vld [vmem:[%s1624] sm:$0xff]
    %v1626 = vsel %vm279, %v1621, 0.0
    %1627 = vadd.xlane.f32.xlu0 %v1626
    %v1628 = vpop.xlane.xlu0 %1627
    %v1629 = vmul.f32 %v1628, %v849
    %v1630 = vsub.f32 %v1621, %v1629
    %v1631 = vmul.f32 %v1630, %v1630
    %v1632 = vsel %vm279, %v1631, 0.0
    %1633 = vadd.xlane.f32.xlu0 %v1632
    %v1634 = vpop.xlane.xlu0 %1633
    %v1635 = vmul.f32 %v1634, %v849
    %v1636 = vadd.f32 %v1635, 1e-05
    %v1637 = vrsqrt.pop %v1636
    %v1638 = vmul.f32 %v1630, %v1637
    %v1639 = vmul.f32 %v1638, %v1623
    %v1640 = vadd.f32 %v1639, %v1625
    %s1641 = scalar_lea.vmem [#allocation16], 32
    %v1642 = vld [vmem:[%s1641] sm:$0xff]
    %v1643 = vld [vmem:[%s1641 + $0x8] sm:$0xff]
    %v1644 = vld [vmem:[%s1641 + $0x10] sm:$0xff]
    %v1645 = vld [vmem:[%s1641 + $0x18] sm:$0xff]
    %s1646 = scalar_lea.vmem [#allocation11], 8
    %v1647 = vld [vmem:[%s1646] sm:$0xff]
    %v1649 = vsel %vm279, %v1640, 0
    %1651 = vmatprep.subr.mxu0 0.0
    %1652 = vmatpush1.msra.mxu0 %v1642
    %1653 = vmatprep.subr.mxu0 0.0
    %1654 = vmatpush1.msra.mxu0 %v1643
    %1655 = vmatprep.subr.mxu0 0.0
    %1656 = vmatpush1.msra.mxu0 %v1644
    %1657 = vmatprep.subr.mxu0 0.0
    %1658 = vmatpush1.msra.mxu0 %v1645
    %1659 = vmatprep.subr.mxu0 0.0
    %1660 = vmatpush1.msra.mxu0 0.0
    %1661 = vmatprep.subr.mxu0 0.0
    %1662 = vmatpush1.msra.mxu0 0.0
    %1663 = vmatprep.subr.mxu0 0.0
    %1664 = vmatpush1.msra.mxu0 0.0
    %1665 = vmatprep.subr.mxu0 0.0
    %1666 = vmatpush1.msra.mxu0 0.0
    %1667 = vmatprep.subr.mxu0 0.0
    %1668 = vmatpush1.msra.mxu0 0.0
    %1669 = vmatprep.subr.mxu0 0.0
    %1670 = vmatpush1.msra.mxu0 0.0
    %1671 = vmatprep.subr.mxu0 0.0
    %1672 = vmatpush1.msra.mxu0 0.0
    %1673 = vmatprep.subr.mxu0 0.0
    %1674 = vmatpush1.msra.mxu0 0.0
    %1675 = vmatprep.subr.mxu0 0.0
    %1676 = vmatpush1.msra.mxu0 0.0
    %1677 = vmatprep.subr.mxu0 0.0
    %1678 = vmatpush1.msra.mxu0 0.0
    %1679 = vmatprep.subr.mxu0 0.0
    %1680 = vmatpush1.msra.mxu0 0.0
    %1681 = vmatprep.subr.mxu0 0.0
    %1682 = vmatpush1.msra.mxu0 0.0
    %1683 = vmatprep.subr.mxu0 0.0
    %1684 = vmatpush1.msra.mxu0 0.0
    %1685 = vmatprep.subr.mxu0 0.0
    %1686 = vmatpush1.msra.mxu0 0.0
    %1687 = vmatprep.subr.mxu0 0.0
    %1688 = vmatpush1.msra.mxu0 0.0
    %1689 = vmatprep.subr.mxu0 0.0
    %1690 = vmatpush1.msra.mxu0 0.0
    %1691 = vmatprep.subr.mxu0 0.0
    %1692 = vmatpush1.msra.mxu0 0.0
    %1693 = vmatprep.subr.mxu0 0.0
    %1694 = vmatpush1.msra.mxu0 0.0
    %1695 = vmatprep.subr.mxu0 0.0
    %1696 = vmatpush1.msra.mxu0 0.0
    %1697 = vmatprep.subr.mxu0 0.0
    %1698 = vmatpush1.msra.mxu0 0.0
    %1699 = vmatprep.subr.mxu0 0.0
    %1700 = vmatpush1.msra.mxu0 0.0
    %1701 = vmatprep.subr.mxu0 0.0
    %1702 = vmatpush1.msra.mxu0 0.0
    %1703 = vmatprep.subr.mxu0 0.0
    %1704 = vmatpush1.msra.mxu0 0.0
    %1705 = vmatprep.subr.mxu0 0.0
    %1706 = vmatpush1.msra.mxu0 0.0
    %1707 = vmatprep.subr.mxu0 0.0
    %1708 = vmatpush1.msra.mxu0 0.0
    %1709 = vmatprep.subr.mxu0 0.0
    %1710 = vmatpush1.msra.mxu0 0.0
    %1711 = vmatprep.subr.mxu0 0.0
    %1712 = vmatpush1.msra.mxu0 0.0
    %1713 = vmatprep.subr.mxu0 0.0
    %1714 = vmatpush1.msra.mxu0 0.0
    %1715 = vmatprep.mubr.f32.mxu0 0.0
    %1716 = vmatmul.mubr.f32.gmra.mrb[0].mxu0 %v1649
    %v1717 = vpop.f32.mrb[0].mxu0
    %v1718 = vadd.f32 %v1647, %v1717
    %v1719 = vpop.f32.mrb[0].mxu0
    %1720 = vdwg.mxu0
    %v1721 = vmul.f32 %v1718, %v1718
    %v1722 = vmul.f32 %v1718, %v1721
    %v1723 = vmul.f32 %v1722, 0.044715
    %v1724 = vadd.f32 %v1718, %v1723
    %v1725 = vmul.f32 %v1724, 0.7978846
    %v1726 = vtanh.pop %v1725
    %v1727 = vadd.f32 %v1726, 1.0
    %v1728 = vmul.f32 %v1727, 0.5
    %v1729 = vmul.f32 %v1718, %v1728
    %s1730 = scalar_lea.vmem %s11, 64
    %v1731 = vld [vmem:[%s1730] sm:$0xff]
    %v1732 = vld [vmem:[%s1730 + $0x8] sm:$0xff]
    %v1733 = vld [vmem:[%s1730 + $0x10] sm:$0xff]
    %v1734 = vld [vmem:[%s1730 + $0x18] sm:$0xff]
    %v1735 = vld [vmem:[%s1730 + $0x20] sm:$0xff]
    %v1736 = vld [vmem:[%s1730 + $0x28] sm:$0xff]
    %v1737 = vld [vmem:[%s1730 + $0x30] sm:$0xff]
    %v1738 = vld [vmem:[%s1730 + $0x38] sm:$0xff]
    %s1739 = scalar_lea.vmem %s6, 128
    %v1740 = vld [vmem:[%s1739] sm:$0xff]
    %v1742 = vsel %vm959, %v1729, 0
    %1744 = vmatprep.subr.mxu0 0.0
    %1745 = vmatpush1.msra.mxu0 %v1731
    %1746 = vmatprep.subr.mxu0 0.0
    %1747 = vmatpush1.msra.mxu0 %v1732
    %1748 = vmatprep.subr.mxu0 0.0
    %1749 = vmatpush1.msra.mxu0 %v1733
    %1750 = vmatprep.subr.mxu0 0.0
    %1751 = vmatpush1.msra.mxu0 %v1734
    %1752 = vmatprep.subr.mxu0 0.0
    %1753 = vmatpush1.msra.mxu0 %v1735
    %1754 = vmatprep.subr.mxu0 0.0
    %1755 = vmatpush1.msra.mxu0 %v1736
    %1756 = vmatprep.subr.mxu0 0.0
    %1757 = vmatpush1.msra.mxu0 %v1737
    %1758 = vmatprep.subr.mxu0 0.0
    %1759 = vmatpush1.msra.mxu0 %v1738
    %1760 = vmatprep.subr.mxu0 0.0
    %1761 = vmatpush1.msra.mxu0 0.0
    %1762 = vmatprep.subr.mxu0 0.0
    %1763 = vmatpush1.msra.mxu0 0.0
    %1764 = vmatprep.subr.mxu0 0.0
    %1765 = vmatpush1.msra.mxu0 0.0
    %1766 = vmatprep.subr.mxu0 0.0
    %1767 = vmatpush1.msra.mxu0 0.0
    %1768 = vmatprep.subr.mxu0 0.0
    %1769 = vmatpush1.msra.mxu0 0.0
    %1770 = vmatprep.subr.mxu0 0.0
    %1771 = vmatpush1.msra.mxu0 0.0
    %1772 = vmatprep.subr.mxu0 0.0
    %1773 = vmatpush1.msra.mxu0 0.0
    %1774 = vmatprep.subr.mxu0 0.0
    %1775 = vmatpush1.msra.mxu0 0.0
    %1776 = vmatprep.subr.mxu0 0.0
    %1777 = vmatpush1.msra.mxu0 0.0
    %1778 = vmatprep.subr.mxu0 0.0
    %1779 = vmatpush1.msra.mxu0 0.0
    %1780 = vmatprep.subr.mxu0 0.0
    %1781 = vmatpush1.msra.mxu0 0.0
    %1782 = vmatprep.subr.mxu0 0.0
    %1783 = vmatpush1.msra.mxu0 0.0
    %1784 = vmatprep.subr.mxu0 0.0
    %1785 = vmatpush1.msra.mxu0 0.0
    %1786 = vmatprep.subr.mxu0 0.0
    %1787 = vmatpush1.msra.mxu0 0.0
    %1788 = vmatprep.subr.mxu0 0.0
    %1789 = vmatpush1.msra.mxu0 0.0
    %1790 = vmatprep.subr.mxu0 0.0
    %1791 = vmatpush1.msra.mxu0 0.0
    %1792 = vmatprep.subr.mxu0 0.0
    %1793 = vmatpush1.msra.mxu0 0.0
    %1794 = vmatprep.subr.mxu0 0.0
    %1795 = vmatpush1.msra.mxu0 0.0
    %1796 = vmatprep.subr.mxu0 0.0
    %1797 = vmatpush1.msra.mxu0 0.0
    %1798 = vmatprep.subr.mxu0 0.0
    %1799 = vmatpush1.msra.mxu0 0.0
    %1800 = vmatprep.subr.mxu0 0.0
    %1801 = vmatpush1.msra.mxu0 0.0
    %1802 = vmatprep.subr.mxu0 0.0
    %1803 = vmatpush1.msra.mxu0 0.0
    %1804 = vmatprep.subr.mxu0 0.0
    %1805 = vmatpush1.msra.mxu0 0.0
    %1806 = vmatprep.subr.mxu0 0.0
    %1807 = vmatpush1.msra.mxu0 0.0
    %1808 = vmatprep.mubr.f32.mxu0 0.0
    %1809 = vmatmul.mubr.f32.gmra.mrb[0].mxu0 %v1742
    %v1810 = vpop.f32.mrb[0].mxu0
    %v1811 = vadd.f32 %v1740, %v1810
    %v1812 = vpop.f32.mrb[0].mxu0
    %1813 = vdwg.mxu0
    %v1814 = vadd.f32 %v1640, %v1811
    %s1815 = scalar_lea.vmem %s6, 152
    %v1816 = vld [vmem:[%s1815] sm:$0xff]
    %s1817 = scalar_lea.vmem %s6, 160
    %v1818 = vld [vmem:[%s1817] sm:$0xff]
    %v1819 = vsel %vm279, %v1814, 0.0
    %1820 = vadd.xlane.f32.xlu0 %v1819
    %v1821 = vpop.xlane.xlu0 %1820
    %v1822 = vmul.f32 %v1821, %v849
    %v1823 = vsub.f32 %v1814, %v1822
    %v1824 = vmul.f32 %v1823, %v1823
    %v1825 = vsel %vm279, %v1824, 0.0
    %1826 = vadd.xlane.f32.xlu0 %v1825
    %v1827 = vpop.xlane.xlu0 %1826
    %v1828 = vmul.f32 %v1827, %v849
    %v1829 = vadd.f32 %v1828, 1e-05
    %v1830 = vrsqrt.pop %v1829
    %v1831 = vmul.f32 %v1823, %v1830
    %v1832 = vmul.f32 %v1831, %v1816
    %v1833 = vadd.f32 %v1832, %v1818
    %s1834 = scalar_lea.vmem %s6, 8
    %v1835 = vld [vmem:[%s1834] sm:$0xff]
    %s1836 = scalar_lea.vmem %s6, 16
    %v1837 = vld [vmem:[%s1836] sm:$0xff]
    %v1838 = vsel %vm279, %v1833, 0.0
    %1839 = vadd.xlane.f32.xlu0 %v1838
    %v1840 = vpop.xlane.xlu0 %1839
    %v1841 = vmul.f32 %v1840, %v849
    %v1842 = vsub.f32 %v1833, %v1841
    %v1843 = vmul.f32 %v1842, %v1842
    %v1844 = vsel %vm279, %v1843, 0.0
    %1845 = vadd.xlane.f32.xlu0 %v1844
    %v1846 = vpop.xlane.xlu0 %1845
    %v1847 = vmul.f32 %v1846, %v849
    %v1848 = vadd.f32 %v1847, 1e-05
    %v1849 = vrsqrt.pop %v1848
    %v1850 = vmul.f32 %v1842, %v1849
    %v1851 = vmul.f32 %v1850, %v1835
    %v1852 = vadd.f32 %v1851, %v1837
    %v1853 = vld [vmem:[%s12] sm:$0xff]
    %v1854 = vld [vmem:[%s12 + $0x8] sm:$0xff]
    %v1855 = vld [vmem:[%s12 + $0x10] sm:$0xff]
    %v1856 = vld [vmem:[%s12 + $0x18] sm:$0xff]
    %v1857 = vld [vmem:[#allocation13] sm:$0xff]
    %v1859 = vsel %vm279, %v1852, 0
    %1861 = vmatprep.subr.mxu0 0.0
    %1862 = vmatpush1.msra.mxu0 %v1853
    %1863 = vmatprep.subr.mxu0 0.0
    %1864 = vmatpush1.msra.mxu0 %v1854
    %1865 = vmatprep.subr.mxu0 0.0
    %1866 = vmatpush1.msra.mxu0 %v1855
    %1867 = vmatprep.subr.mxu0 0.0
    %1868 = vmatpush1.msra.mxu0 %v1856
    %1869 = vmatprep.subr.mxu0 0.0
    %1870 = vmatpush1.msra.mxu0 0.0
    %1871 = vmatprep.subr.mxu0 0.0
    %1872 = vmatpush1.msra.mxu0 0.0
    %1873 = vmatprep.subr.mxu0 0.0
    %1874 = vmatpush1.msra.mxu0 0.0
    %1875 = vmatprep.subr.mxu0 0.0
    %1876 = vmatpush1.msra.mxu0 0.0
    %1877 = vmatprep.subr.mxu0 0.0
    %1878 = vmatpush1.msra.mxu0 0.0
    %1879 = vmatprep.subr.mxu0 0.0
    %1880 = vmatpush1.msra.mxu0 0.0
    %1881 = vmatprep.subr.mxu0 0.0
    %1882 = vmatpush1.msra.mxu0 0.0
    %1883 = vmatprep.subr.mxu0 0.0
    %1884 = vmatpush1.msra.mxu0 0.0
    %1885 = vmatprep.subr.mxu0 0.0
    %1886 = vmatpush1.msra.mxu0 0.0
    %1887 = vmatprep.subr.mxu0 0.0
    %1888 = vmatpush1.msra.mxu0 0.0
    %1889 = vmatprep.subr.mxu0 0.0
    %1890 = vmatpush1.msra.mxu0 0.0
    %1891 = vmatprep.subr.mxu0 0.0
    %1892 = vmatpush1.msra.mxu0 0.0
    %1893 = vmatprep.subr.mxu0 0.0
    %1894 = vmatpush1.msra.mxu0 0.0
    %1895 = vmatprep.subr.mxu0 0.0
    %1896 = vmatpush1.msra.mxu0 0.0
    %1897 = vmatprep.subr.mxu0 0.0
    %1898 = vmatpush1.msra.mxu0 0.0
    %1899 = vmatprep.subr.mxu0 0.0
    %1900 = vmatpush1.msra.mxu0 0.0
    %1901 = vmatprep.subr.mxu0 0.0
    %1902 = vmatpush1.msra.mxu0 0.0
    %1903 = vmatprep.subr.mxu0 0.0
    %1904 = vmatpush1.msra.mxu0 0.0
    %1905 = vmatprep.subr.mxu0 0.0
    %1906 = vmatpush1.msra.mxu0 0.0
    %1907 = vmatprep.subr.mxu0 0.0
    %1908 = vmatpush1.msra.mxu0 0.0
    %1909 = vmatprep.subr.mxu0 0.0
    %1910 = vmatpush1.msra.mxu0 0.0
    %1911 = vmatprep.subr.mxu0 0.0
    %1912 = vmatpush1.msra.mxu0 0.0
    %1913 = vmatprep.subr.mxu0 0.0
    %1914 = vmatpush1.msra.mxu0 0.0
    %1915 = vmatprep.subr.mxu0 0.0
    %1916 = vmatpush1.msra.mxu0 0.0
    %1917 = vmatprep.subr.mxu0 0.0
    %1918 = vmatpush1.msra.mxu0 0.0
    %1919 = vmatprep.subr.mxu0 0.0
    %1920 = vmatpush1.msra.mxu0 0.0
    %1921 = vmatprep.subr.mxu0 0.0
    %1922 = vmatpush1.msra.mxu0 0.0
    %1923 = vmatprep.subr.mxu0 0.0
    %1924 = vmatpush1.msra.mxu0 0.0
    %1925 = vmatprep.mubr.f32.mxu0 0.0
    %1926 = vmatmul.mubr.f32.gmra.mrb[0].mxu0 %v1859
    %v1927 = vpop.f32.mrb[0].mxu0
    %v1928 = vadd.f32 %v1857, %v1927
    %v1929 = vpop.f32.mrb[0].mxu0
    %1930 = vdwg.mxu0
    %v1931 = vsub.f32 %v1928, %v185
    %1932 = vset.pattern.permute.xlu0 2
    %1933 = vperm.xlu0 %1932, %v159
    %v1934 = vpop.permute.xlu0 %1933
    %v1936 = vmul.f32 %v1931, %v1934
    %v1937 = vmul.f32 %v1936, %v175
    %v1938 = vadd.f32 %v1937, %v166
    %1939 = vst [vmem:[#allocation17] sm:$0xff] %v1938
    // Predicated region
    $region90: #{tpu_custom_call.1} parent=1 // pred_check
      _
    $region91: #{tpu_custom_call.1} parent=1 // pred_check_branch
      %1941 = sbr.rel (0) target = $region93
    $region92: #{tpu_custom_call.1} parent=1 // pred_region
      %s1943 = ssub.s32 128, 128
      %1944 = vsyncadd [#allocation4], %s1943
      %s1946 = sshll.u32 [#allocation17], 4
      %s1947 = int_to_ptr.vmem [resolvable:$true] %s1946
      %1949 = dma.vmem_to_hbm [thread:$0]  %s1947, 128, %s13, [#allocation4]
    $region93: #{tpu_custom_call.1} parent=1 // pred_fallthru
      _
    // Predicated region
    $region94: #{tpu_custom_call.1} parent=1 // pred_check
      _
    $region95: #{tpu_custom_call.1} parent=1 // pred_check_branch
      %1951 = sbr.rel (0) target = $region97
    $region96: #{tpu_custom_call.1} parent=1 // pred_region
      %1952 = dma.done [#allocation4], 128
    $region97: #{tpu_custom_call.1} parent=1 // pred_fallthru
      _
    %1953 = vsyncpa [#allocation3], 1
    %1954 = vsyncpa [#allocation6], 1
    %1955 = vsyncpa [#allocation9], 1
    %1956 = vsyncpa [#allocation12], 1
    %1957 = vsyncpa [#allocation15], 1
    %1958 = vsyncpa [#allocation4], 1

</llo_original>
